<compile_context>
chip_gen: v5e
topology: v5e:2x2
jax: 0.10.0
libtpu: 0.0.40
codegen_flags: <defaults>
</compile_context>

<pallas_src>
import functools

import jax
import jax.numpy as jnp
from jax.experimental import pallas as pl
from jax.experimental.pallas import tpu as pltpu


# ------------------------------ fused kernel ------------------------------- #

def _pipnet_fused_kernel(patches_ref, w_bb_ref, b_bb_ref, w_add_ref, b_add_ref,
                         w_cls_ref, b_cls_ref,
                         proto_ref, pooled_ref, out_ref,
                         *, s_valid, mask_rows, inference):
    """One spatial row-tile of one image: backbone matmul+ReLU -> add-on matmul +
    softmax -> lane-dense transposed proto store -> (masked) running max-pool ->
    (last step) optional clamp + NonNegLinear classification."""
    s = pl.program_id(1)
    ts = patches_ref.shape[1]

    # Backbone 3x3 conv as im2col matmul + ReLU (MXU, f32 accumulate). `feats`
    # never leaves VMEM.
    patches = patches_ref[0]                                        # (ts, Kp)
    feats = jnp.dot(patches, w_bb_ref[...],
                    preferred_element_type=jnp.float32) + b_bb_ref[...]
    feats = jnp.maximum(feats, 0.0)                                 # (ts, C_feat) f32

    # Add-on 1x1 conv + softmax over the prototype axis (f32 epilogue).
    logits = jnp.dot(feats.astype(w_add_ref.dtype), w_add_ref[...],
                     preferred_element_type=jnp.float32) + b_add_ref[...]
    m = jnp.max(logits, axis=-1, keepdims=True)
    e = jnp.exp(logits - m)
    denom = jnp.sum(e, axis=-1, keepdims=True)
    proto = e * pl.reciprocal(denom, approx=False)                  # (ts, P)

    # Store proto directly in NCHW-flat layout: (P, ts) block, spatial on lanes.
    # ts is a multiple of 128 -> unmasked lane-dense stores.
    proto_ref[0] = proto.T.astype(proto_ref.dtype)

    # Running global max-pool (accumulator held in VMEM across the s axis).
    if mask_rows:
        row_ids = s * ts + jax.lax.broadcasted_iota(jnp.int32, (ts, 1), 0)
        valid = row_ids < s_valid
        # softmax outputs are strictly > 0, so a 0 fill never wins the max.
        proto_m = jnp.where(valid, proto, 0.0)
    else:
        proto_m = proto
    tile_max = jnp.max(proto_m, axis=0, keepdims=True)[None]        # (1, 1, P)

    @pl.when(s == 0)
    def _init():
        pooled_ref[...] = tile_max

    @pl.when(s != 0)
    def _update():
        pooled_ref[...] = jnp.maximum(pooled_ref[...], tile_max)

    # Finalize on the last spatial step: optional inference clamp + NonNegLinear.
    @pl.when(s == pl.num_programs(1) - 1)
    def _finalize():
        pooled = pooled_ref[...]                                    # (1, 1, P)
        if inference:
            pooled = jnp.where(pooled < 0.1, 0.0, pooled)
            pooled_ref[...] = pooled
        w = jnp.maximum(w_cls_ref[...], 0.0)                        # relu(weight)
        cls = jnp.dot(pooled.reshape(1, -1), w,
                      preferred_element_type=jnp.float32) + b_cls_ref[...]
        out_ref[...] = cls.reshape(out_ref.shape).astype(out_ref.dtype)


# ------------------------------- glue (JAX) -------------------------------- #

def _round_up(x, m):
    return ((x + m - 1) // m) * m


def _im2col_3x3(x_nhwc):
    """3x3 / stride 1 / pad 1 im2col. Returns (B, H*W, 9*C); column order (kh, kw, C)."""
    B, H, W, C = x_nhwc.shape
    xp = jnp.pad(x_nhwc, ((0, 0), (1, 1), (1, 1), (0, 0)))
    cols = [xp[:, dy:dy + H, dx:dx + W, :] for dy in range(3) for dx in range(3)]
    patches = jnp.concatenate(cols, axis=-1)
    return patches.reshape(B, H * W, 9 * C)


def pipnet_forward(x_nchw, w_bb, b_bb, w_add, b_add, w_cls, b_cls, *,
                   inference=False, dot_dtype=jnp.float32, ts_target=512):
    """Returns (proto_features [B,P,H,W], pooled [B,P], out [B,num_classes])."""
    B, C_in, H, W = x_nchw.shape
    C_feat = w_bb.shape[-1]
    P = w_add.shape[-1]
    NC = w_cls.shape[-1]
    S = H * W

    x_nhwc = jnp.transpose(x_nchw, (0, 2, 3, 1))
    patches = _im2col_3x3(x_nhwc)                       # (B, S, 9*C_in)

    # Pad contraction dim to a sublane multiple (aligned weight/patch layout).
    K = patches.shape[-1]
    Kp = _round_up(K, 8)
    w_bb_mat = w_bb.reshape(9 * C_in, C_feat)
    if Kp != K:
        patches = jnp.pad(patches, ((0, 0), (0, 0), (0, Kp - K)))
        w_bb_mat = jnp.pad(w_bb_mat, ((0, Kp - K), (0, 0)))

    # Spatial tiling: tile size is a multiple of 128 so the transposed proto store
    # (spatial on lanes) is lane-dense; the remainder is padding + in-kernel masking.
    ts = min(_round_up(ts_target, 128), _round_up(S, 128))
    S_pad = _round_up(S, ts)
    num_s = S_pad // ts
    if S_pad != S:
        patches = jnp.pad(patches, ((0, 0), (0, S_pad - S), (0, 0)))

    # Optional reduced-precision MXU operands (accumulation stays f32).
    patches = patches.astype(dot_dtype)
    w_bb_mat = w_bb_mat.astype(dot_dtype)
    w_add_c = w_add.astype(dot_dtype)

    kernel = functools.partial(_pipnet_fused_kernel, s_valid=S,
                               mask_rows=(S_pad != S), inference=inference)

    proto_flat, pooled3, out3 = pl.pallas_call(
        kernel,
        out_shape=(jax.ShapeDtypeStruct((B, P, S_pad), jnp.float32),   # NCHW-flat proto
                   jax.ShapeDtypeStruct((B, 1, P), jnp.float32),       # pooled
                   jax.ShapeDtypeStruct((B, 1, NC), jnp.float32)),     # class logits
        grid=(B, num_s),
        in_specs=[
            pl.BlockSpec((1, ts, Kp), lambda b, s: (b, s, 0)),
            pl.BlockSpec((Kp, C_feat), lambda b, s: (0, 0)),
            pl.BlockSpec((1, C_feat), lambda b, s: (0, 0)),
            pl.BlockSpec((C_feat, P), lambda b, s: (0, 0)),
            pl.BlockSpec((1, P), lambda b, s: (0, 0)),
            pl.BlockSpec((P, NC), lambda b, s: (0, 0)),
            pl.BlockSpec((1, NC), lambda b, s: (0, 0)),
        ],
        out_specs=(
            pl.BlockSpec((1, P, ts), lambda b, s: (b, 0, s)),
            pl.BlockSpec((1, 1, P), lambda b, s: (b, 0, 0)),    # accumulator over s
            pl.BlockSpec((1, 1, NC), lambda b, s: (b, 0, 0)),   # written on last s step
        ),
        compiler_params=pltpu.CompilerParams(
            dimension_semantics=("parallel", "arbitrary")),
    )(patches, w_bb_mat, b_bb.reshape(1, C_feat), w_add_c, b_add.reshape(1, P),
      w_cls, b_cls.reshape(1, NC))

    proto_features = proto_flat[:, :, :S].reshape(B, P, H, W)   # already NCHW
    pooled = pooled3.reshape(B, P)
    out = out3.reshape(B, NC)
    return proto_features, pooled, out


# ---------------------------- pure-JAX reference ---------------------------- #

def _ref_forward(x_nchw, w_bb, b_bb, w_add, b_add, w_cls, b_cls, *, inference=False):
    hp = jax.lax.Precision.HIGHEST
    x_nhwc = jnp.transpose(x_nchw, (0, 2, 3, 1))
    feats = jax.lax.conv_general_dilated(
        x_nhwc, w_bb, window_strides=(1, 1), padding="SAME",
        dimension_numbers=("NHWC", "HWIO", "NHWC"), precision=hp) + b_bb
    feats = jnp.maximum(feats, 0.0)
    logits = jnp.einsum("bhwc,cp->bhwp", feats, w_add, precision=hp) + b_add
    proto = jax.nn.softmax(logits, axis=-1)
    pooled = jnp.max(proto, axis=(1, 2))
    if inference:
        pooled = jnp.where(pooled < 0.1, 0.0, pooled)
    out = jnp.dot(pooled, jnp.maximum(w_cls, 0.0), precision=hp) + b_cls
    return jnp.transpose(proto, (0, 3, 1, 2)), pooled, out


# ----------------------------------- main ----------------------------------- #

if __name__ == "__main__":
    key = jax.random.PRNGKey(0)
    B, C_in, H, W = 2, 3, 16, 16
    C_feat = 32          # args.num_features (backbone feature channels)
    P = 128              # num_prototypes
    NUM_CLASSES = 10

    k1, k2, k3, k4, k5, k6, k7 = jax.random.split(key, 7)
    x = jax.random.normal(k1, (B, C_in, H, W), jnp.float32)
    # backbone 3x3 conv weights in HWIO layout (== PyTorch (O,I,kh,kw).transpose(2,3,1,0))
    w_bb = jax.random.normal(k2, (3, 3, C_in, C_feat), jnp.float32) * 0.1
    b_bb = jax.random.normal(k3, (C_feat,), jnp.float32) * 0.1
    # add_on 1x1 conv: (C_feat, P)
    w_add = jax.random.normal(k4, (C_feat, P), jnp.float32) * 0.1
    b_add = jax.random.normal(k5, (P,), jnp.float32) * 0.1
    # NonNegLinear classification weights, stored transposed as (P, NUM_CLASSES)
    w_cls = jax.random.normal(k6, (P, NUM_CLASSES), jnp.float32) * 0.1
    b_cls = jax.random.normal(k7, (NUM_CLASSES,), jnp.float32) * 0.1

    # --- f32 path, training mode ---
    proto_features, pooled, out = pipnet_forward(
        x, w_bb, b_bb, w_add, b_add, w_cls, b_cls, inference=False)
    jax.block_until_ready((proto_features, pooled, out))

    pf_r, pooled_r, out_r = _ref_forward(
        x, w_bb, b_bb, w_add, b_add, w_cls, b_cls, inference=False)
    assert proto_features.shape == (B, P, H, W)
    assert pooled.shape == (B, P) and out.shape == (B, NUM_CLASSES)
    assert jnp.allclose(proto_features, pf_r, atol=1e-4, rtol=1e-4)
    assert jnp.allclose(pooled, pooled_r, atol=1e-4, rtol=1e-4)
    assert jnp.allclose(out, out_r, atol=1e-4, rtol=1e-4)

    # --- f32 path, inference mode (clamped pooled) ---
    pf_i, pooled_i, out_i = pipnet_forward(
        x, w_bb, b_bb, w_add, b_add, w_cls, b_cls, inference=True)
    jax.block_until_ready((pf_i, pooled_i, out_i))
    _, pooled_ir, out_ir = _ref_forward(
        x, w_bb, b_bb, w_add, b_add, w_cls, b_cls, inference=True)
    assert jnp.allclose(pooled_i, pooled_ir, atol=1e-4, rtol=1e-4)
    assert jnp.allclose(out_i, out_ir, atol=1e-4, rtol=1e-4)

    # --- f32 path, non-divisible spatial size (exercises padding + masking) ---
    H2, W2 = 10, 14      # S = 140 -> padded to 256 (ts multiple of 128)
    x2 = jax.random.normal(k1, (B, C_in, H2, W2), jnp.float32)
    pf2, pooled2, out2 = pipnet_forward(
        x2, w_bb, b_bb, w_add, b_add, w_cls, b_cls, inference=False)
    jax.block_until_ready((pf2, pooled2, out2))
    pf2_r, pooled2_r, out2_r = _ref_forward(
        x2, w_bb, b_bb, w_add, b_add, w_cls, b_cls, inference=False)
    assert jnp.allclose(pf2, pf2_r, atol=1e-4, rtol=1e-4)
    assert jnp.allclose(pooled2, pooled2_r, atol=1e-4, rtol=1e-4)
    assert jnp.allclose(out2, out2_r, atol=1e-4, rtol=1e-4)

    # --- bf16 MXU-operand path (f32 accumulate/epilogue), loose tolerance ---
    pf_b, pooled_b, out_b = pipnet_forward(
        x, w_bb, b_bb, w_add, b_add, w_cls, b_cls,
        inference=False, dot_dtype=jnp.bfloat16)
    jax.block_until_ready((pf_b, pooled_b, out_b))
    assert jnp.all(jnp.isfinite(out_b))
    assert jnp.allclose(pooled_b, pooled_r, atol=5e-2, rtol=1e-1)
    assert jnp.allclose(out_b, out_r, atol=5e-2, rtol=1e-1)

    print("KERNEL_OK")
</pallas_src>

<mosaic_0001>
module attributes {stable_mosaic.version = 11 : i64} {
  func.func @_pipnet_fused_kernel(%arg0: i32, %arg1: i32, %arg2: memref<1x256x32xf32, #tpu.memory_space<vmem>>, %arg3: memref<32x32xf32, #tpu.memory_space<vmem>>, %arg4: memref<1x32xf32, #tpu.memory_space<vmem>>, %arg5: memref<32x128xf32, #tpu.memory_space<vmem>>, %arg6: memref<1x128xf32, #tpu.memory_space<vmem>>, %arg7: memref<128x10xf32, #tpu.memory_space<vmem>>, %arg8: memref<1x10xf32, #tpu.memory_space<vmem>>, %arg9: memref<1x128x256xf32, #tpu.memory_space<vmem>>, %arg10: memref<1x1x128xf32, #tpu.memory_space<vmem>>, %arg11: memref<1x1x10xf32, #tpu.memory_space<vmem>>) attributes {dimension_semantics = [#tpu.dimension_semantics<parallel>, #tpu.dimension_semantics<arbitrary>], iteration_bounds = array<i64: 2, 1>, scalar_prefetch = 0 : i64, scratch_operands = 0 : i64, tpu.core_type = #tpu.core_type<tc>, window_params = [{transform_indices = @transform_0, window_bounds = array<i64: 1, 256, 32>}, {pipeline_mode = #tpu.pipeline_mode<synchronous>, transform_indices = @transform_1, window_bounds = array<i64: 32, 32>}, {pipeline_mode = #tpu.pipeline_mode<synchronous>, transform_indices = @transform_2, window_bounds = array<i64: 1, 32>}, {pipeline_mode = #tpu.pipeline_mode<synchronous>, transform_indices = @transform_3, window_bounds = array<i64: 32, 128>}, {pipeline_mode = #tpu.pipeline_mode<synchronous>, transform_indices = @transform_4, window_bounds = array<i64: 1, 128>}, {pipeline_mode = #tpu.pipeline_mode<synchronous>, transform_indices = @transform_5, window_bounds = array<i64: 128, 10>}, {pipeline_mode = #tpu.pipeline_mode<synchronous>, transform_indices = @transform_6, window_bounds = array<i64: 1, 10>}, {transform_indices = @transform_7, window_bounds = array<i64: 1, 128, 256>}, {transform_indices = @transform_8, window_bounds = array<i64: 1, 1, 128>}, {transform_indices = @transform_9, window_bounds = array<i64: 1, 1, 10>}]} {
    %c0 = arith.constant 0 : index
    %c0_0 = arith.constant 0 : index
    %c0_1 = arith.constant 0 : index
    %0 = vector.load %arg2[%c0, %c0_0, %c0_1] : memref<1x256x32xf32, #tpu.memory_space<vmem>>, vector<1x256x32xf32>
    %1 = vector.shape_cast %0 : vector<1x256x32xf32> to vector<256x32xf32>
    %c0_2 = arith.constant 0 : index
    %c0_3 = arith.constant 0 : index
    %2 = vector.load %arg3[%c0_2, %c0_3] : memref<32x32xf32, #tpu.memory_space<vmem>>, vector<32x32xf32>
    %cst = arith.constant dense<0.000000e+00> : vector<256x32xf32>
    %3 = tpu.matmul %1, %2, %cst {dimension_numbers = #tpu.dot_dimension_numbers<[1], [0], [0], [1], [0, 0, 1, 1], [], []>} : vector<256x32xf32>, vector<32x32xf32>, vector<256x32xf32> -> vector<256x32xf32>
    %c0_4 = arith.constant 0 : index
    %c0_5 = arith.constant 0 : index
    %4 = vector.load %arg4[%c0_4, %c0_5] : memref<1x32xf32, #tpu.memory_space<vmem>>, vector<1x32xf32>
    %5 = vector.broadcast %4 : vector<1x32xf32> to vector<256x32xf32>
    %6 = arith.addf %3, %5 : vector<256x32xf32>
    %cst_6 = arith.constant 0.000000e+00 : f32
    %7 = vector.broadcast %cst_6 : f32 to vector<256x32xf32>
    %8 = arith.maximumf %6, %7 : vector<256x32xf32>
    %c0_7 = arith.constant 0 : index
    %c0_8 = arith.constant 0 : index
    %9 = vector.load %arg5[%c0_7, %c0_8] : memref<32x128xf32, #tpu.memory_space<vmem>>, vector<32x128xf32>
    %cst_9 = arith.constant dense<0.000000e+00> : vector<256x128xf32>
    %10 = tpu.matmul %8, %9, %cst_9 {dimension_numbers = #tpu.dot_dimension_numbers<[1], [0], [0], [1], [0, 0, 1, 1], [], []>} : vector<256x32xf32>, vector<32x128xf32>, vector<256x128xf32> -> vector<256x128xf32>
    %c0_10 = arith.constant 0 : index
    %c0_11 = arith.constant 0 : index
    %11 = vector.load %arg6[%c0_10, %c0_11] : memref<1x128xf32, #tpu.memory_space<vmem>>, vector<1x128xf32>
    %12 = vector.broadcast %11 : vector<1x128xf32> to vector<256x128xf32>
    %13 = arith.addf %10, %12 : vector<256x128xf32>
    %cst_12 = arith.constant dense<0xFF800000> : vector<256xf32>
    %14 = vector.multi_reduction <maximumf>, %13, %cst_12 [1] : vector<256x128xf32> to vector<256xf32>
    %15 = vector.shape_cast %14 : vector<256xf32> to vector<256x1xf32>
    %16 = vector.broadcast %15 : vector<256x1xf32> to vector<256x128xf32>
    %17 = arith.subf %13, %16 : vector<256x128xf32>
    %18 = math.exp %17 : vector<256x128xf32>
    %cst_13 = arith.constant dense<0.000000e+00> : vector<256xf32>
    %19 = vector.multi_reduction <add>, %18, %cst_13 [1] : vector<256x128xf32> to vector<256xf32>
    %20 = vector.shape_cast %19 : vector<256xf32> to vector<256x1xf32>
    %21 = tpu.reciprocal %20 : vector<256x1xf32> -> vector<256x1xf32>
    %22 = vector.broadcast %21 : vector<256x1xf32> to vector<256x128xf32>
    %23 = arith.mulf %18, %22 : vector<256x128xf32>
    %24 = tpu.transpose %23, [1, 0] : vector<256x128xf32> -> vector<128x256xf32>
    %c0_14 = arith.constant 0 : index
    %c0_15 = arith.constant 0 : index
    %c0_16 = arith.constant 0 : index
    %25 = vector.load %arg9[%c0_14, %c0_15, %c0_16] : memref<1x128x256xf32, #tpu.memory_space<vmem>>, vector<1x128x256xf32>
    %26 = vector.shape_cast %25 : vector<1x128x256xf32> to vector<128x256xf32>
    %27 = vector.shape_cast %24 : vector<128x256xf32> to vector<1x128x256xf32>
    tpu.vector_store %arg9[%c0_14, %c0_15, %c0_16], %27 {strides = array<i32>} : memref<1x128x256xf32, #tpu.memory_space<vmem>>, vector<1x128x256xf32>,
    %cst_17 = arith.constant dense<0xFF800000> : vector<128xf32>
    %28 = vector.multi_reduction <maximumf>, %23, %cst_17 [0] : vector<256x128xf32> to vector<128xf32>
    %29 = vector.shape_cast %28 : vector<128xf32> to vector<1x128xf32>
    %30 = vector.shape_cast %29 : vector<1x128xf32> to vector<1x1x128xf32>
    %c0_i32 = arith.constant 0 : i32
    %31 = arith.cmpi eq, %arg1, %c0_i32 : i32
    %32 = arith.extui %31 : i1 to i32
    %c0_i32_18 = arith.constant 0 : i32
    %33 = arith.cmpi ne, %32, %c0_i32_18 : i32
    scf.if %33 {
      %c0_23 = arith.constant 0 : index
      %c0_24 = arith.constant 0 : index
      %c0_25 = arith.constant 0 : index
      %40 = vector.load %arg10[%c0_23, %c0_24, %c0_25] : memref<1x1x128xf32, #tpu.memory_space<vmem>>, vector<1x1x128xf32>
      tpu.vector_store %arg10[%c0_23, %c0_24, %c0_25], %30 {strides = array<i32>} : memref<1x1x128xf32, #tpu.memory_space<vmem>>, vector<1x1x128xf32>,
    } else {
    }
    %c0_i32_19 = arith.constant 0 : i32
    %34 = arith.cmpi ne, %arg1, %c0_i32_19 : i32
    %35 = arith.extui %34 : i1 to i32
    %c0_i32_20 = arith.constant 0 : i32
    %36 = arith.cmpi ne, %35, %c0_i32_20 : i32
    scf.if %36 {
      %c0_23 = arith.constant 0 : index
      %c0_24 = arith.constant 0 : index
      %c0_25 = arith.constant 0 : index
      %40 = vector.load %arg10[%c0_23, %c0_24, %c0_25] : memref<1x1x128xf32, #tpu.memory_space<vmem>>, vector<1x1x128xf32>
      %41 = arith.maximumf %40, %30 : vector<1x1x128xf32>
      %c0_26 = arith.constant 0 : index
      %c0_27 = arith.constant 0 : index
      %c0_28 = arith.constant 0 : index
      %42 = vector.load %arg10[%c0_26, %c0_27, %c0_28] : memref<1x1x128xf32, #tpu.memory_space<vmem>>, vector<1x1x128xf32>
      tpu.vector_store %arg10[%c0_26, %c0_27, %c0_28], %41 {strides = array<i32>} : memref<1x1x128xf32, #tpu.memory_space<vmem>>, vector<1x1x128xf32>,
    } else {
    }
    %c0_i32_21 = arith.constant 0 : i32
    %37 = arith.cmpi eq, %arg1, %c0_i32_21 : i32
    %38 = arith.extui %37 : i1 to i32
    %c0_i32_22 = arith.constant 0 : i32
    %39 = arith.cmpi ne, %38, %c0_i32_22 : i32
    scf.if %39 {
      %c0_23 = arith.constant 0 : index
      %c0_24 = arith.constant 0 : index
      %c0_25 = arith.constant 0 : index
      %40 = vector.load %arg10[%c0_23, %c0_24, %c0_25] : memref<1x1x128xf32, #tpu.memory_space<vmem>>, vector<1x1x128xf32>
      %c0_26 = arith.constant 0 : index
      %c0_27 = arith.constant 0 : index
      %41 = vector.load %arg7[%c0_26, %c0_27] : memref<128x10xf32, #tpu.memory_space<vmem>>, vector<128x10xf32>
      %cst_28 = arith.constant 0.000000e+00 : f32
      %42 = vector.broadcast %cst_28 : f32 to vector<128x10xf32>
      %43 = arith.maximumf %41, %42 : vector<128x10xf32>
      %44 = vector.shape_cast %40 : vector<1x1x128xf32> to vector<1x128xf32>
      %cst_29 = arith.constant dense<0.000000e+00> : vector<1x10xf32>
      %45 = tpu.matmul %44, %43, %cst_29 {dimension_numbers = #tpu.dot_dimension_numbers<[1], [0], [0], [1], [0, 0, 1, 1], [], []>} : vector<1x128xf32>, vector<128x10xf32>, vector<1x10xf32> -> vector<1x10xf32>
      %c0_30 = arith.constant 0 : index
      %c0_31 = arith.constant 0 : index
      %46 = vector.load %arg8[%c0_30, %c0_31] : memref<1x10xf32, #tpu.memory_space<vmem>>, vector<1x10xf32>
      %47 = arith.addf %45, %46 : vector<1x10xf32>
      %48 = vector.shape_cast %47 : vector<1x10xf32> to vector<1x1x10xf32>
      %c0_32 = arith.constant 0 : index
      %c0_33 = arith.constant 0 : index
      %c0_34 = arith.constant 0 : index
      %49 = vector.load %arg11[%c0_32, %c0_33, %c0_34] : memref<1x1x10xf32, #tpu.memory_space<vmem>>, vector<1x1x10xf32>
      tpu.vector_store %arg11[%c0_32, %c0_33, %c0_34], %48 {strides = array<i32>} : memref<1x1x10xf32, #tpu.memory_space<vmem>>, vector<1x1x10xf32>,
    } else {
    }
    return
  }
  func.func @transform_0(%arg0: i32, %arg1: i32) -> (i32, i32, i32) {
    %c0_i32 = arith.constant 0 : i32
    %c0_i32_0 = arith.constant 0 : i32
    return %arg0, %arg1, %c0_i32 : i32, i32, i32
  }
  func.func @transform_1(%arg0: i32, %arg1: i32) -> (i32, i32) {
    %c0_i32 = arith.constant 0 : i32
    %c0_i32_0 = arith.constant 0 : i32
    %c0_i32_1 = arith.constant 0 : i32
    return %c0_i32, %c0_i32_0 : i32, i32
  }
  func.func @transform_2(%arg0: i32, %arg1: i32) -> (i32, i32) {
    %c0_i32 = arith.constant 0 : i32
    %c0_i32_0 = arith.constant 0 : i32
    %c0_i32_1 = arith.constant 0 : i32
    return %c0_i32, %c0_i32_0 : i32, i32
  }
  func.func @transform_3(%arg0: i32, %arg1: i32) -> (i32, i32) {
    %c0_i32 = arith.constant 0 : i32
    %c0_i32_0 = arith.constant 0 : i32
    %c0_i32_1 = arith.constant 0 : i32
    return %c0_i32, %c0_i32_0 : i32, i32
  }
  func.func @transform_4(%arg0: i32, %arg1: i32) -> (i32, i32) {
    %c0_i32 = arith.constant 0 : i32
    %c0_i32_0 = arith.constant 0 : i32
    %c0_i32_1 = arith.constant 0 : i32
    return %c0_i32, %c0_i32_0 : i32, i32
  }
  func.func @transform_5(%arg0: i32, %arg1: i32) -> (i32, i32) {
    %c0_i32 = arith.constant 0 : i32
    %c0_i32_0 = arith.constant 0 : i32
    %c0_i32_1 = arith.constant 0 : i32
    return %c0_i32, %c0_i32_0 : i32, i32
  }
  func.func @transform_6(%arg0: i32, %arg1: i32) -> (i32, i32) {
    %c0_i32 = arith.constant 0 : i32
    %c0_i32_0 = arith.constant 0 : i32
    %c0_i32_1 = arith.constant 0 : i32
    return %c0_i32, %c0_i32_0 : i32, i32
  }
  func.func @transform_7(%arg0: i32, %arg1: i32) -> (i32, i32, i32) {
    %c0_i32 = arith.constant 0 : i32
    %c0_i32_0 = arith.constant 0 : i32
    return %arg0, %c0_i32, %arg1 : i32, i32, i32
  }
  func.func @transform_8(%arg0: i32, %arg1: i32) -> (i32, i32, i32) {
    %c0_i32 = arith.constant 0 : i32
    %c0_i32_0 = arith.constant 0 : i32
    %c0_i32_1 = arith.constant 0 : i32
    return %arg0, %c0_i32, %c0_i32_0 : i32, i32, i32
  }
  func.func @transform_9(%arg0: i32, %arg1: i32) -> (i32, i32, i32) {
    %c0_i32 = arith.constant 0 : i32
    %c0_i32_0 = arith.constant 0 : i32
    %c0_i32_1 = arith.constant 0 : i32
    return %arg0, %c0_i32, %c0_i32_0 : i32, i32, i32
  }
}

</mosaic_0001>

<llo_original>
// kernel: tpu_custom_call.1
$region0: #{tpu_custom_call.1}
  #allocation0 [shape = 'u32[]', space=smem, size = 0x4, offset = 0x4, fixed_abs, tag = 'smem constant byte address 0x4 - core index']
  #allocation1 [shape = 'u32[72,128]{1,0:T(1,128)}', space=vmem, size = 0x9000, scoped, tag = 'internal scratch']
  %s0 = inlined_call_operand.vmem [shape: f32[2,256,32], index: 0, kind: input, shape index: {}]
  %s1 = inlined_call_operand.vmem [shape: f32[32,32], index: 1, kind: input, shape index: {}]
  %s2 = inlined_call_operand.vmem [shape: f32[1,32], index: 2, kind: input, shape index: {}]
  %s3 = inlined_call_operand.vmem [shape: f32[32,128], index: 3, kind: input, shape index: {}]
  %s4 = inlined_call_operand.vmem [shape: f32[1,128], index: 4, kind: input, shape index: {}]
  %s5 = inlined_call_operand.vmem [shape: f32[128,10], index: 5, kind: input, shape index: {}]
  %s6 = inlined_call_operand.vmem [shape: f32[1,10], index: 6, kind: input, shape index: {}]
  %s7 = inlined_call_operand.hbm [shape: f32[2,128,256], index: 7, kind: output, shape index: {0}]
  %s8 = inlined_call_operand.hbm [shape: f32[2,1,128], index: 8, kind: output, shape index: {1}]
  %s9 = inlined_call_operand.hbm [shape: f32[2,1,10], index: 9, kind: output, shape index: {2}]
  %10 = xla_tuple %s7, %s8, %s9
  %s11 = sld [smem:[#allocation0]]
  $region89: #{tpu_custom_call.1} parent=0
    _
  %s13 = ssub.s32 1, %s11
  %s14 = scalar_select 0, %s13, %s11
  $region1: #{tpu_custom_call.1} parent=0
    #allocation2 [shape = 'u8[262144]{0}', space=vmem, size = 0x40000, scoped, tag = 'output window, operand 0']
    #allocation3 [shape = 's32[2]{0}', space=sflag, size = 0x8, scoped, tag = 'scoped memory for tpu_custom_call.1']
    #allocation4 [shape = 'u8[1024]{0}', space=vmem, size = 0x400, scoped, tag = 'output window, operand 1']
    #allocation5 [shape = 's32[2]{0}', space=sflag, size = 0x8, scoped, tag = 'scoped memory for tpu_custom_call.1']
    #allocation6 [shape = 'u8[1024]{0}', space=vmem, size = 0x400, scoped, tag = 'output window, operand 2']
    %15 = vsyncpa [#allocation3], 0
    %s16 = scalar_lea.sflag [#allocation3], 1
    %17 = vsyncpa %s16, 0
    %18 = vsyncpa [#allocation5], 0
    %s19 = scalar_lea.sflag [#allocation5], 1
    %20 = vsyncpa %s19, 0
    loop: start=0, step=1, limit=4
    $region2: #{tpu_custom_call.1} parent=1 // loop_pre_header
      _
    $region3: #{tpu_custom_call.1} parent=1 // loop_header
      %s22 = sphi 0, %s26
      %p23 = scmp.ge.s32.totalorder %s22, 4
      %s29 = sphi 0, %s41
      %s30 = sphi 0, %s37
      %s31 = sphi 0, %s29
      %s32 = sphi 0, %s30
      %s33 = sphi 0, %s31
      %s34 = sphi 0, %s32
      %s46 = sphi 0, %s48
      %s49 = sphi 0, %s46
      %s50 = sphi 0, %s49
      %s66 = sphi 0, %s50
      %s70 = sphi 0, %s70
      %s72 = sphi 0, %s70
      %s73 = sphi 0, %s72
      %s87 = sphi 0, %s73
      %s91 = sphi 0, %s91
      %s93 = sphi 0, %s91
      %s94 = sphi 0, %s93
      %s108 = sphi 0, %s94
      %s112 = sphi 0, %s112
      %s114 = sphi 0, %s112
      %s115 = sphi 0, %s114
      %s129 = sphi 0, %s115
      %s133 = sphi 0, %s133
      %s135 = sphi 0, %s133
      %s136 = sphi 0, %s135
      %s150 = sphi 0, %s136
      %s154 = sphi 0, %s154
      %s156 = sphi 0, %s154
      %s157 = sphi 0, %s156
      %s171 = sphi 0, %s157
      %s175 = sphi 0, %s175
      %s177 = sphi 0, %s175
      %s178 = sphi 0, %s177
      %s192 = sphi 0, %s178
      %s200 = sphi 0, %s202
      %s203 = sphi 0, %s200
      %s204 = sphi 0, %s203
      %s220 = sphi 0, %s204
      %s226 = sphi 0, %s228
      %s229 = sphi 0, %s226
      %s230 = sphi 0, %s229
      %s246 = sphi 0, %s230
      %s252 = sphi 0, %s254
      %s255 = sphi 0, %s252
      %s256 = sphi 0, %s255
      %s272 = sphi 0, %s256
    $region4: #{tpu_custom_call.1} parent=1 // loop_header_branch
      %25 = sbr.rel (%p23) target = $region8
    $region5: #{tpu_custom_call.1} parent=1 // loop_body
      %s27 = ssub.s32 %s22, 1
      %s28 = ssub.s32 %s22, 2
      %s35 = sadd.s32 1, %s30
      %p36 = scmp.ge.s32.totalorder %s35, 1
      %s37 = scalar_select %p36, 0, %s35
      %s38 = sadd.s32 1, %s29
      %s39 = scalar_select %p36, %s38, %s29
      %p40 = scmp.ge.s32.totalorder %s39, 2
      %s41 = scalar_select %p40, 0, %s39
      %s42 = ssub.s32 %s29, %s41
      %s43 = ssub.s32 %s30, %s37
      %s44 = sor.u32 %s42, %s43
      %p45 = scmp.eq.s32.totalorder %s44, 0
      %s47 = sadd.s32 %s46, 1
      %s48 = scalar_select %p45, %s46, %s47
      %p51 = pneg %p45
      %p52 = scmp.eq.s32.totalorder %s22, 1
      %p53 = por %p51, %p52
      %p54 = scmp.ne.s32.totalorder %s46, %s49
      %p55 = scmp.eq.s32.totalorder %s22, 0
      %p56 = por %p54, %p55
      %p57 = scmp.ne.s32.totalorder %s46, %s49
      %p58 = scmp.eq.s32.totalorder %s27, 1
      %p59 = por %p57, %p58
      %p60 = scmp.ne.s32.totalorder %s49, %s50
      %p61 = scmp.eq.s32.totalorder %s27, 0
      %p62 = por %p60, %p61
      %p63 = scmp.ne.s32.totalorder %s49, %s50
      %p64 = scmp.eq.s32.totalorder %s28, 1
      %p65 = por %p63, %p64
      %p67 = scmp.ne.s32.totalorder %s50, %s66
      %p68 = scmp.eq.s32.totalorder %s28, 0
      %p69 = por %p67, %p68
      %s71 = sadd.s32 %s70, 1
      %p74 = scmp.eq.s32.totalorder %s22, 1
      %p75 = scmp.ne.s32.totalorder %s70, %s72
      %p76 = scmp.eq.s32.totalorder %s22, 0
      %p77 = por %p75, %p76
      %p78 = scmp.ne.s32.totalorder %s70, %s72
      %p79 = scmp.eq.s32.totalorder %s27, 1
      %p80 = por %p78, %p79
      %p81 = scmp.ne.s32.totalorder %s72, %s73
      %p82 = scmp.eq.s32.totalorder %s27, 0
      %p83 = por %p81, %p82
      %p84 = scmp.ne.s32.totalorder %s72, %s73
      %p85 = scmp.eq.s32.totalorder %s28, 1
      %p86 = por %p84, %p85
      %p88 = scmp.ne.s32.totalorder %s73, %s87
      %p89 = scmp.eq.s32.totalorder %s28, 0
      %p90 = por %p88, %p89
      %s92 = sadd.s32 %s91, 1
      %p95 = scmp.eq.s32.totalorder %s22, 1
      %p96 = scmp.ne.s32.totalorder %s91, %s93
      %p97 = scmp.eq.s32.totalorder %s22, 0
      %p98 = por %p96, %p97
      %p99 = scmp.ne.s32.totalorder %s91, %s93
      %p100 = scmp.eq.s32.totalorder %s27, 1
      %p101 = por %p99, %p100
      %p102 = scmp.ne.s32.totalorder %s93, %s94
      %p103 = scmp.eq.s32.totalorder %s27, 0
      %p104 = por %p102, %p103
      %p105 = scmp.ne.s32.totalorder %s93, %s94
      %p106 = scmp.eq.s32.totalorder %s28, 1
      %p107 = por %p105, %p106
      %p109 = scmp.ne.s32.totalorder %s94, %s108
      %p110 = scmp.eq.s32.totalorder %s28, 0
      %p111 = por %p109, %p110
      %s113 = sadd.s32 %s112, 1
      %p116 = scmp.eq.s32.totalorder %s22, 1
      %p117 = scmp.ne.s32.totalorder %s112, %s114
      %p118 = scmp.eq.s32.totalorder %s22, 0
      %p119 = por %p117, %p118
      %p120 = scmp.ne.s32.totalorder %s112, %s114
      %p121 = scmp.eq.s32.totalorder %s27, 1
      %p122 = por %p120, %p121
      %p123 = scmp.ne.s32.totalorder %s114, %s115
      %p124 = scmp.eq.s32.totalorder %s27, 0
      %p125 = por %p123, %p124
      %p126 = scmp.ne.s32.totalorder %s114, %s115
      %p127 = scmp.eq.s32.totalorder %s28, 1
      %p128 = por %p126, %p127
      %p130 = scmp.ne.s32.totalorder %s115, %s129
      %p131 = scmp.eq.s32.totalorder %s28, 0
      %p132 = por %p130, %p131
      %s134 = sadd.s32 %s133, 1
      %p137 = scmp.eq.s32.totalorder %s22, 1
      %p138 = scmp.ne.s32.totalorder %s133, %s135
      %p139 = scmp.eq.s32.totalorder %s22, 0
      %p140 = por %p138, %p139
      %p141 = scmp.ne.s32.totalorder %s133, %s135
      %p142 = scmp.eq.s32.totalorder %s27, 1
      %p143 = por %p141, %p142
      %p144 = scmp.ne.s32.totalorder %s135, %s136
      %p145 = scmp.eq.s32.totalorder %s27, 0
      %p146 = por %p144, %p145
      %p147 = scmp.ne.s32.totalorder %s135, %s136
      %p148 = scmp.eq.s32.totalorder %s28, 1
      %p149 = por %p147, %p148
      %p151 = scmp.ne.s32.totalorder %s136, %s150
      %p152 = scmp.eq.s32.totalorder %s28, 0
      %p153 = por %p151, %p152
      %s155 = sadd.s32 %s154, 1
      %p158 = scmp.eq.s32.totalorder %s22, 1
      %p159 = scmp.ne.s32.totalorder %s154, %s156
      %p160 = scmp.eq.s32.totalorder %s22, 0
      %p161 = por %p159, %p160
      %p162 = scmp.ne.s32.totalorder %s154, %s156
      %p163 = scmp.eq.s32.totalorder %s27, 1
      %p164 = por %p162, %p163
      %p165 = scmp.ne.s32.totalorder %s156, %s157
      %p166 = scmp.eq.s32.totalorder %s27, 0
      %p167 = por %p165, %p166
      %p168 = scmp.ne.s32.totalorder %s156, %s157
      %p169 = scmp.eq.s32.totalorder %s28, 1
      %p170 = por %p168, %p169
      %p172 = scmp.ne.s32.totalorder %s157, %s171
      %p173 = scmp.eq.s32.totalorder %s28, 0
      %p174 = por %p172, %p173
      %s176 = sadd.s32 %s175, 1
      %p179 = scmp.eq.s32.totalorder %s22, 1
      %p180 = scmp.ne.s32.totalorder %s175, %s177
      %p181 = scmp.eq.s32.totalorder %s22, 0
      %p182 = por %p180, %p181
      %p183 = scmp.ne.s32.totalorder %s175, %s177
      %p184 = scmp.eq.s32.totalorder %s27, 1
      %p185 = por %p183, %p184
      %p186 = scmp.ne.s32.totalorder %s177, %s178
      %p187 = scmp.eq.s32.totalorder %s27, 0
      %p188 = por %p186, %p187
      %p189 = scmp.ne.s32.totalorder %s177, %s178
      %p190 = scmp.eq.s32.totalorder %s28, 1
      %p191 = por %p189, %p190
      %p193 = scmp.ne.s32.totalorder %s178, %s192
      %p194 = scmp.eq.s32.totalorder %s28, 0
      %p195 = por %p193, %p194
      %s196 = ssub.s32 %s29, %s41
      %s197 = ssub.s32 %s30, %s37
      %s198 = sor.u32 %s196, %s197
      %p199 = scmp.eq.s32.totalorder %s198, 0
      %s201 = sadd.s32 %s200, 1
      %s202 = scalar_select %p199, %s200, %s201
      %p205 = pneg %p199
      %p206 = scmp.eq.s32.totalorder %s22, 1
      %p207 = por %p205, %p206
      %p208 = scmp.ne.s32.totalorder %s200, %s203
      %p209 = scmp.eq.s32.totalorder %s22, 0
      %p210 = por %p208, %p209
      %p211 = scmp.ne.s32.totalorder %s200, %s203
      %p212 = scmp.eq.s32.totalorder %s27, 1
      %p213 = por %p211, %p212
      %p214 = scmp.ne.s32.totalorder %s203, %s204
      %p215 = scmp.eq.s32.totalorder %s27, 0
      %p216 = por %p214, %p215
      %p217 = scmp.ne.s32.totalorder %s203, %s204
      %p218 = scmp.eq.s32.totalorder %s28, 1
      %p219 = por %p217, %p218
      %p221 = scmp.ne.s32.totalorder %s204, %s220
      %p222 = scmp.eq.s32.totalorder %s28, 0
      %p223 = por %p221, %p222
      %s224 = ssub.s32 %s29, %s41
      %p225 = scmp.eq.s32.totalorder %s224, 0
      %s227 = sadd.s32 %s226, 1
      %s228 = scalar_select %p225, %s226, %s227
      %p231 = pneg %p225
      %p232 = scmp.eq.s32.totalorder %s22, 1
      %p233 = por %p231, %p232
      %p234 = scmp.ne.s32.totalorder %s226, %s229
      %p235 = scmp.eq.s32.totalorder %s22, 0
      %p236 = por %p234, %p235
      %p237 = scmp.ne.s32.totalorder %s226, %s229
      %p238 = scmp.eq.s32.totalorder %s27, 1
      %p239 = por %p237, %p238
      %p240 = scmp.ne.s32.totalorder %s229, %s230
      %p241 = scmp.eq.s32.totalorder %s27, 0
      %p242 = por %p240, %p241
      %p243 = scmp.ne.s32.totalorder %s229, %s230
      %p244 = scmp.eq.s32.totalorder %s28, 1
      %p245 = por %p243, %p244
      %p247 = scmp.ne.s32.totalorder %s230, %s246
      %p248 = scmp.eq.s32.totalorder %s28, 0
      %p249 = por %p247, %p248
      %s250 = ssub.s32 %s29, %s41
      %p251 = scmp.eq.s32.totalorder %s250, 0
      %s253 = sadd.s32 %s252, 1
      %s254 = scalar_select %p251, %s252, %s253
      %p257 = pneg %p251
      %p258 = scmp.eq.s32.totalorder %s22, 1
      %p259 = por %p257, %p258
      %p260 = scmp.ne.s32.totalorder %s252, %s255
      %p261 = scmp.eq.s32.totalorder %s22, 0
      %p262 = por %p260, %p261
      %p263 = scmp.ne.s32.totalorder %s252, %s255
      %p264 = scmp.eq.s32.totalorder %s27, 1
      %p265 = por %p263, %p264
      %p266 = scmp.ne.s32.totalorder %s255, %s256
      %p267 = scmp.eq.s32.totalorder %s27, 0
      %p268 = por %p266, %p267
      %p269 = scmp.ne.s32.totalorder %s255, %s256
      %p270 = scmp.eq.s32.totalorder %s28, 1
      %p271 = por %p269, %p270
      %p273 = scmp.ne.s32.totalorder %s256, %s272
      %p274 = scmp.eq.s32.totalorder %s28, 0
      %p275 = por %p273, %p274
      %p276 = scmp.le.s32.totalorder 1, %s22
      %p277 = scmp.lt.s32.totalorder %s22, 3
      %p278 = pnand %p276, %p277
      %p279 = pneg %p278
      // Predicated region
      $region9: #{tpu_custom_call.1} parent=5 // pred_check
        _
      $region10: #{tpu_custom_call.1} parent=5 // pred_check_branch
        %281 = sbr.rel (%p278) target = $region12
      $region11: #{tpu_custom_call.1} parent=5 // pred_region
        %s282 = ssub.s32 %s22, 1
        // Predicated region
        $region13: #{tpu_custom_call.1} parent=11 // pred_check
          %p283 = pneg %p83
        $region14: #{tpu_custom_call.1} parent=11 // pred_check_branch
          %285 = sbr.rel (%p283) target = $region16
        $region15: #{tpu_custom_call.1} parent=11 // pred_region
          _
        $region16: #{tpu_custom_call.1} parent=11 // pred_fallthru
          _
        // Predicated region
        $region17: #{tpu_custom_call.1} parent=11 // pred_check
          %p286 = pneg %p104
        $region18: #{tpu_custom_call.1} parent=11 // pred_check_branch
          %288 = sbr.rel (%p286) target = $region20
        $region19: #{tpu_custom_call.1} parent=11 // pred_region
          _
        $region20: #{tpu_custom_call.1} parent=11 // pred_fallthru
          _
        // Predicated region
        $region21: #{tpu_custom_call.1} parent=11 // pred_check
          %p289 = pneg %p125
        $region22: #{tpu_custom_call.1} parent=11 // pred_check_branch
          %291 = sbr.rel (%p289) target = $region24
        $region23: #{tpu_custom_call.1} parent=11 // pred_region
          _
        $region24: #{tpu_custom_call.1} parent=11 // pred_fallthru
          _
        // Predicated region
        $region25: #{tpu_custom_call.1} parent=11 // pred_check
          %p292 = pneg %p146
        $region26: #{tpu_custom_call.1} parent=11 // pred_check_branch
          %294 = sbr.rel (%p292) target = $region28
        $region27: #{tpu_custom_call.1} parent=11 // pred_region
          _
        $region28: #{tpu_custom_call.1} parent=11 // pred_fallthru
          _
        // Predicated region
        $region29: #{tpu_custom_call.1} parent=11 // pred_check
          %p295 = pneg %p167
        $region30: #{tpu_custom_call.1} parent=11 // pred_check_branch
          %297 = sbr.rel (%p295) target = $region32
        $region31: #{tpu_custom_call.1} parent=11 // pred_region
          _
        $region32: #{tpu_custom_call.1} parent=11 // pred_fallthru
          _
        // Predicated region
        $region33: #{tpu_custom_call.1} parent=11 // pred_check
          %p298 = pneg %p188
        $region34: #{tpu_custom_call.1} parent=11 // pred_check_branch
          %300 = sbr.rel (%p298) target = $region36
        $region35: #{tpu_custom_call.1} parent=11 // pred_region
          _
        $region36: #{tpu_custom_call.1} parent=11 // pred_fallthru
          _
      $region12: #{tpu_custom_call.1} parent=5 // pred_fallthru
        _
      %p301 = scmp.lt.s32.totalorder %s22, 2
      // Predicated region
      $region37: #{tpu_custom_call.1} parent=5 // pred_check
        %p302 = pneg %p301
      $region38: #{tpu_custom_call.1} parent=5 // pred_check_branch
        %304 = sbr.rel (%p302) target = $region40
      $region39: #{tpu_custom_call.1} parent=5 // pred_region
        // Predicated region
        $region41: #{tpu_custom_call.1} parent=39 // pred_check
          %p305 = pneg %p56
        $region42: #{tpu_custom_call.1} parent=39 // pred_check_branch
          %307 = sbr.rel (%p305) target = $region44
        $region43: #{tpu_custom_call.1} parent=39 // pred_region
          %s308 = smul.u32 32, %s30
          %p309 = scmp.lt.s32.totalorder %s29, 1
          %s310 = scalar_select %p309, %s29, 1
          %p311 = scmp.lt.s32.totalorder %s308, 31
          %s312 = scalar_select %p311, %s308, 31
          %s313 = smul.addr %s310, 32
          %s314 = sadd.s32 %s312, %s313
          %s315 = smul.addr %s314, 8
          %s316 = scalar_lea.vmem %s0, %s315
          %s317 = smul.u32 32, %s30
        $region44: #{tpu_custom_call.1} parent=39 // pred_fallthru
          _
      $region40: #{tpu_custom_call.1} parent=5 // pred_fallthru
        _
      %p318 = scmp.le.s32.totalorder 1, %s22
      %p319 = scmp.lt.s32.totalorder %s22, 3
      %p320 = pnand %p318, %p319
      %p321 = pneg %p320
      // Predicated region
      $region45: #{tpu_custom_call.1} parent=5 // pred_check
        _
      $region46: #{tpu_custom_call.1} parent=5 // pred_check_branch
        %323 = sbr.rel (%p320) target = $region48
      $region47: #{tpu_custom_call.1} parent=5 // pred_region
        %s324 = ssub.s32 %s22, 1
        %s325 = smul.u32 32, %s32
        %p326 = scmp.lt.s32.totalorder %s31, 1
        %s327 = scalar_select %p326, %s31, 1
        %p328 = scmp.lt.s32.totalorder %s325, 31
        %s329 = scalar_select %p328, %s325, 31
        %s330 = smul.addr %s327, 32
        %s331 = sadd.s32 %s329, %s330
        %s332 = smul.addr %s331, 8
        %s333 = scalar_lea.vmem %s0, %s332
        %p334 = pneg %p62
        %p335 = pneg %p59
        %p336 = pneg %p83
        %p337 = pneg %p80
        %p338 = pneg %p104
        %p339 = pneg %p101
        %p340 = pneg %p125
        %p341 = pneg %p122
        %p342 = pneg %p146
        %p343 = pneg %p143
        %p344 = pneg %p167
        %p345 = pneg %p164
        %p346 = pneg %p188
        %p347 = pneg %p185
        %p348 = pneg %p216
        %p349 = pneg %p213
        %s350 = sand.u32 %s203, 1
        %s351 = scalar_lea.sflag [#allocation3], %s350
        %s352 = sand.u32 %s203, 1
        %s353 = smul.addr %s352, 256
        %s354 = scalar_lea.vmem [#allocation2], %s353
        %p355 = pneg %p242
        %p356 = pneg %p239
        %s357 = sand.u32 %s27, 1
        %s358 = scalar_lea.sflag [#allocation5], %s357
        %s359 = sand.u32 %s229, 1
        %s360 = scalar_lea.vmem [#allocation4], %s359
        %p361 = pneg %p268
        %p362 = pneg %p265
        %s363 = sand.u32 %s27, 1
        %s364 = scalar_lea.sflag [#allocation5], %s363
        %s365 = sand.u32 %s255, 1
        %s366 = scalar_lea.vmem [#allocation6], %s365
        %s367 = smul.u32 32, %s32
        %p368 = scmp.lt.s32.totalorder %s31, 1
        %s369 = scalar_select %p368, %s31, 1
        %p370 = scmp.lt.s32.totalorder %s367, 31
        %s371 = scalar_select %p370, %s367, 31
        %s372 = smul.addr %s369, 32
        %s373 = sadd.s32 %s371, %s372
        %s374 = smul.addr %s373, 8
        %s375 = scalar_lea.vmem %s0, %s374
        %s376 = smul.u32 32, %s32
        %s377 = smul.u32 2, %s32
        %v378 = vld [vmem:[%s375] sm:$0xff]
        %v379 = vld [vmem:[%s375 + $0x8] sm:$0xff]
        %v380 = vld [vmem:[%s375 + $0x10] sm:$0xff]
        %v381 = vld [vmem:[%s375 + $0x18] sm:$0xff]
        %v382 = vld [vmem:[%s375 + $0x20] sm:$0xff]
        %v383 = vld [vmem:[%s375 + $0x28] sm:$0xff]
        %v384 = vld [vmem:[%s375 + $0x30] sm:$0xff]
        %v385 = vld [vmem:[%s375 + $0x38] sm:$0xff]
        %v386 = vld [vmem:[%s375 + $0x40] sm:$0xff]
        %v387 = vld [vmem:[%s375 + $0x48] sm:$0xff]
        %v388 = vld [vmem:[%s375 + $0x50] sm:$0xff]
        %v389 = vld [vmem:[%s375 + $0x58] sm:$0xff]
        %v390 = vld [vmem:[%s375 + $0x60] sm:$0xff]
        %v391 = vld [vmem:[%s375 + $0x68] sm:$0xff]
        %v392 = vld [vmem:[%s375 + $0x70] sm:$0xff]
        %v393 = vld [vmem:[%s375 + $0x78] sm:$0xff]
        %v394 = vld [vmem:[%s375 + $0x80] sm:$0xff]
        %v395 = vld [vmem:[%s375 + $0x88] sm:$0xff]
        %v396 = vld [vmem:[%s375 + $0x90] sm:$0xff]
        %v397 = vld [vmem:[%s375 + $0x98] sm:$0xff]
        %v398 = vld [vmem:[%s375 + $0xa0] sm:$0xff]
        %v399 = vld [vmem:[%s375 + $0xa8] sm:$0xff]
        %v400 = vld [vmem:[%s375 + $0xb0] sm:$0xff]
        %v401 = vld [vmem:[%s375 + $0xb8] sm:$0xff]
        %v402 = vld [vmem:[%s375 + $0xc0] sm:$0xff]
        %v403 = vld [vmem:[%s375 + $0xc8] sm:$0xff]
        %v404 = vld [vmem:[%s375 + $0xd0] sm:$0xff]
        %v405 = vld [vmem:[%s375 + $0xd8] sm:$0xff]
        %v406 = vld [vmem:[%s375 + $0xe0] sm:$0xff]
        %v407 = vld [vmem:[%s375 + $0xe8] sm:$0xff]
        %v408 = vld [vmem:[%s375 + $0xf0] sm:$0xff]
        %v409 = vld [vmem:[%s375 + $0xf8] sm:$0xff]
        %v410 = vld [vmem:[%s1] sm:$0xff]
        %v411 = vld [vmem:[%s1 + $0x8] sm:$0xff]
        %v412 = vld [vmem:[%s1 + $0x10] sm:$0xff]
        %v413 = vld [vmem:[%s1 + $0x18] sm:$0xff]
        %v414 = vld [vmem:[%s2] sm:$0x1]
        %v416 = vperm.slane %v414, 0
        %vm418 = vcmask 261120
        %v420 = vsel %vm418, %v378, 0
        %v423 = vsel %vm418, %v379, 0
        %v426 = vsel %vm418, %v380, 0
        %v429 = vsel %vm418, %v381, 0
        %v432 = vsel %vm418, %v382, 0
        %v435 = vsel %vm418, %v383, 0
        %v438 = vsel %vm418, %v384, 0
        %v441 = vsel %vm418, %v385, 0
        %v444 = vsel %vm418, %v386, 0
        %v447 = vsel %vm418, %v387, 0
        %v450 = vsel %vm418, %v388, 0
        %v453 = vsel %vm418, %v389, 0
        %v456 = vsel %vm418, %v390, 0
        %v459 = vsel %vm418, %v391, 0
        %v462 = vsel %vm418, %v392, 0
        %v465 = vsel %vm418, %v393, 0
        %v468 = vsel %vm418, %v394, 0
        %v471 = vsel %vm418, %v395, 0
        %v474 = vsel %vm418, %v396, 0
        %v477 = vsel %vm418, %v397, 0
        %v480 = vsel %vm418, %v398, 0
        %v483 = vsel %vm418, %v399, 0
        %v486 = vsel %vm418, %v400, 0
        %v489 = vsel %vm418, %v401, 0
        %v492 = vsel %vm418, %v402, 0
        %v495 = vsel %vm418, %v403, 0
        %v498 = vsel %vm418, %v404, 0
        %v501 = vsel %vm418, %v405, 0
        %v504 = vsel %vm418, %v406, 0
        %v507 = vsel %vm418, %v407, 0
        %v510 = vsel %vm418, %v408, 0
        %v513 = vsel %vm418, %v409, 0
        %515 = vmatpush.msra.mxu0 0.0
        %516 = vmatpush.msra.mxu0 0.0
        %517 = vmatpush.msra.mxu0 0.0
        %518 = vmatpush.msra.mxu0 0.0
        %519 = vmatpush.msra.mxu0 0.0
        %520 = vmatpush.msra.mxu0 0.0
        %521 = vmatpush.msra.mxu0 0.0
        %522 = vmatpush.msra.mxu0 0.0
        %523 = vmatpush.msra.mxu0 0.0
        %524 = vmatpush.msra.mxu0 0.0
        %525 = vmatpush.msra.mxu0 0.0
        %526 = vmatpush.msra.mxu0 0.0
        %527 = vmatpush.msra.mxu0 %v413
        %528 = vmatpush.msra.mxu0 %v412
        %529 = vmatpush.msra.mxu0 %v411
        %530 = vmatpush.msra.mxu0 %v410
        %531 = vmatmul.f32.gmra.mxu0 %v420
        %v532 = vpop.f32.mrf.mxu0
        %v533 = vadd.f32 %v416, %v532
        %534 = vmatmul.f32.gmra.mxu0 %v423
        %v535 = vpop.f32.mrf.mxu0
        %v536 = vadd.f32 %v416, %v535
        %537 = vmatmul.f32.gmra.mxu0 %v426
        %v538 = vpop.f32.mrf.mxu0
        %v539 = vadd.f32 %v416, %v538
        %540 = vmatmul.f32.gmra.mxu0 %v429
        %v541 = vpop.f32.mrf.mxu0
        %v542 = vadd.f32 %v416, %v541
        %543 = vmatmul.f32.gmra.mxu0 %v432
        %v544 = vpop.f32.mrf.mxu0
        %v545 = vadd.f32 %v416, %v544
        %546 = vmatmul.f32.gmra.mxu0 %v435
        %v547 = vpop.f32.mrf.mxu0
        %v548 = vadd.f32 %v416, %v547
        %549 = vmatmul.f32.gmra.mxu0 %v438
        %v550 = vpop.f32.mrf.mxu0
        %v551 = vadd.f32 %v416, %v550
        %552 = vmatmul.f32.gmra.mxu0 %v441
        %v553 = vpop.f32.mrf.mxu0
        %v554 = vadd.f32 %v416, %v553
        %555 = vmatmul.f32.gmra.mxu0 %v444
        %v556 = vpop.f32.mrf.mxu0
        %v557 = vadd.f32 %v416, %v556
        %558 = vmatmul.f32.gmra.mxu0 %v447
        %v559 = vpop.f32.mrf.mxu0
        %v560 = vadd.f32 %v416, %v559
        %561 = vmatmul.f32.gmra.mxu0 %v450
        %v562 = vpop.f32.mrf.mxu0
        %v563 = vadd.f32 %v416, %v562
        %564 = vmatmul.f32.gmra.mxu0 %v453
        %v565 = vpop.f32.mrf.mxu0
        %v566 = vadd.f32 %v416, %v565
        %567 = vmatmul.f32.gmra.mxu0 %v456
        %v568 = vpop.f32.mrf.mxu0
        %v569 = vadd.f32 %v416, %v568
        %570 = vmatmul.f32.gmra.mxu0 %v459
        %v571 = vpop.f32.mrf.mxu0
        %v572 = vadd.f32 %v416, %v571
        %573 = vmatmul.f32.gmra.mxu0 %v462
        %v574 = vpop.f32.mrf.mxu0
        %v575 = vadd.f32 %v416, %v574
        %576 = vmatmul.f32.gmra.mxu0 %v465
        %v577 = vpop.f32.mrf.mxu0
        %v578 = vadd.f32 %v416, %v577
        %579 = vmatmul.f32.gmra.mxu0 %v468
        %v580 = vpop.f32.mrf.mxu0
        %v581 = vadd.f32 %v416, %v580
        %582 = vmatmul.f32.gmra.mxu0 %v471
        %v583 = vpop.f32.mrf.mxu0
        %v584 = vadd.f32 %v416, %v583
        %585 = vmatmul.f32.gmra.mxu0 %v474
        %v586 = vpop.f32.mrf.mxu0
        %v587 = vadd.f32 %v416, %v586
        %588 = vmatmul.f32.gmra.mxu0 %v477
        %v589 = vpop.f32.mrf.mxu0
        %v590 = vadd.f32 %v416, %v589
        %591 = vmatmul.f32.gmra.mxu0 %v480
        %v592 = vpop.f32.mrf.mxu0
        %v593 = vadd.f32 %v416, %v592
        %594 = vmatmul.f32.gmra.mxu0 %v483
        %v595 = vpop.f32.mrf.mxu0
        %v596 = vadd.f32 %v416, %v595
        %597 = vmatmul.f32.gmra.mxu0 %v486
        %v598 = vpop.f32.mrf.mxu0
        %v599 = vadd.f32 %v416, %v598
        %600 = vmatmul.f32.gmra.mxu0 %v489
        %v601 = vpop.f32.mrf.mxu0
        %v602 = vadd.f32 %v416, %v601
        %603 = vmatmul.f32.gmra.mxu0 %v492
        %v604 = vpop.f32.mrf.mxu0
        %v605 = vadd.f32 %v416, %v604
        %606 = vmatmul.f32.gmra.mxu0 %v495
        %v607 = vpop.f32.mrf.mxu0
        %v608 = vadd.f32 %v416, %v607
        %609 = vmatmul.f32.gmra.mxu0 %v498
        %v610 = vpop.f32.mrf.mxu0
        %v611 = vadd.f32 %v416, %v610
        %612 = vmatmul.f32.gmra.mxu0 %v501
        %v613 = vpop.f32.mrf.mxu0
        %v614 = vadd.f32 %v416, %v613
        %615 = vmatmul.f32.gmra.mxu0 %v504
        %v616 = vpop.f32.mrf.mxu0
        %v617 = vadd.f32 %v416, %v616
        %618 = vmatmul.f32.gmra.mxu0 %v507
        %v619 = vpop.f32.mrf.mxu0
        %v620 = vadd.f32 %v416, %v619
        %621 = vmatmul.f32.gmra.mxu0 %v510
        %v622 = vpop.f32.mrf.mxu0
        %v623 = vadd.f32 %v416, %v622
        %624 = vmatmul.f32.gmra.mxu0 %v513
        %v625 = vpop.f32.mrf.mxu0
        %v626 = vadd.f32 %v416, %v625
        %627 = vdwg.mxu0
        %v628 = vmax.f32 %v533, 0.0
        %v629 = vmax.f32 %v536, 0.0
        %v630 = vmax.f32 %v539, 0.0
        %v631 = vmax.f32 %v542, 0.0
        %v632 = vmax.f32 %v545, 0.0
        %v633 = vmax.f32 %v548, 0.0
        %v634 = vmax.f32 %v551, 0.0
        %v635 = vmax.f32 %v554, 0.0
        %v636 = vmax.f32 %v557, 0.0
        %v637 = vmax.f32 %v560, 0.0
        %v638 = vmax.f32 %v563, 0.0
        %v639 = vmax.f32 %v566, 0.0
        %v640 = vmax.f32 %v569, 0.0
        %v641 = vmax.f32 %v572, 0.0
        %v642 = vmax.f32 %v575, 0.0
        %v643 = vmax.f32 %v578, 0.0
        %v644 = vmax.f32 %v581, 0.0
        %v645 = vmax.f32 %v584, 0.0
        %v646 = vmax.f32 %v587, 0.0
        %v647 = vmax.f32 %v590, 0.0
        %v648 = vmax.f32 %v593, 0.0
        %v649 = vmax.f32 %v596, 0.0
        %v650 = vmax.f32 %v599, 0.0
        %v651 = vmax.f32 %v602, 0.0
        %v652 = vmax.f32 %v605, 0.0
        %v653 = vmax.f32 %v608, 0.0
        %v654 = vmax.f32 %v611, 0.0
        %v655 = vmax.f32 %v614, 0.0
        %v656 = vmax.f32 %v617, 0.0
        %v657 = vmax.f32 %v620, 0.0
        %v658 = vmax.f32 %v623, 0.0
        %v659 = vmax.f32 %v626, 0.0
        %v660 = vld [vmem:[%s3] sm:$0xff]
        %v661 = vld [vmem:[%s3 + $0x8] sm:$0xff]
        %v662 = vld [vmem:[%s3 + $0x10] sm:$0xff]
        %v663 = vld [vmem:[%s3 + $0x18] sm:$0xff]
        %v664 = vld [vmem:[%s4] sm:$0x1]
        %v666 = vperm.slane %v664, 0
        %v669 = vsel %vm418, %v628, 0
        %v672 = vsel %vm418, %v629, 0
        %v675 = vsel %vm418, %v630, 0
        %v678 = vsel %vm418, %v631, 0
        %v681 = vsel %vm418, %v632, 0
        %v684 = vsel %vm418, %v633, 0
        %v687 = vsel %vm418, %v634, 0
        %v690 = vsel %vm418, %v635, 0
        %v693 = vsel %vm418, %v636, 0
        %v696 = vsel %vm418, %v637, 0
        %v699 = vsel %vm418, %v638, 0
        %v702 = vsel %vm418, %v639, 0
        %v705 = vsel %vm418, %v640, 0
        %v708 = vsel %vm418, %v641, 0
        %v711 = vsel %vm418, %v642, 0
        %v714 = vsel %vm418, %v643, 0
        %v717 = vsel %vm418, %v644, 0
        %v720 = vsel %vm418, %v645, 0
        %v723 = vsel %vm418, %v646, 0
        %v726 = vsel %vm418, %v647, 0
        %v729 = vsel %vm418, %v648, 0
        %v732 = vsel %vm418, %v649, 0
        %v735 = vsel %vm418, %v650, 0
        %v738 = vsel %vm418, %v651, 0
        %v741 = vsel %vm418, %v652, 0
        %v744 = vsel %vm418, %v653, 0
        %v747 = vsel %vm418, %v654, 0
        %v750 = vsel %vm418, %v655, 0
        %v753 = vsel %vm418, %v656, 0
        %v756 = vsel %vm418, %v657, 0
        %v759 = vsel %vm418, %v658, 0
        %v762 = vsel %vm418, %v659, 0
        %764 = vmatpush.msra.mxu0 0.0
        %765 = vmatpush.msra.mxu0 0.0
        %766 = vmatpush.msra.mxu0 0.0
        %767 = vmatpush.msra.mxu0 0.0
        %768 = vmatpush.msra.mxu0 0.0
        %769 = vmatpush.msra.mxu0 0.0
        %770 = vmatpush.msra.mxu0 0.0
        %771 = vmatpush.msra.mxu0 0.0
        %772 = vmatpush.msra.mxu0 0.0
        %773 = vmatpush.msra.mxu0 0.0
        %774 = vmatpush.msra.mxu0 0.0
        %775 = vmatpush.msra.mxu0 0.0
        %776 = vmatpush.msra.mxu0 %v663
        %777 = vmatpush.msra.mxu0 %v662
        %778 = vmatpush.msra.mxu0 %v661
        %779 = vmatpush.msra.mxu0 %v660
        %780 = vmatmul.f32.gmra.mxu0 %v669
        %v781 = vpop.f32.mrf.mxu0
        %v782 = vadd.f32 %v666, %v781
        %783 = vmatmul.f32.gmra.mxu0 %v672
        %v784 = vpop.f32.mrf.mxu0
        %v785 = vadd.f32 %v666, %v784
        %786 = vmatmul.f32.gmra.mxu0 %v675
        %v787 = vpop.f32.mrf.mxu0
        %v788 = vadd.f32 %v666, %v787
        %789 = vmatmul.f32.gmra.mxu0 %v678
        %v790 = vpop.f32.mrf.mxu0
        %v791 = vadd.f32 %v666, %v790
        %792 = vmatmul.f32.gmra.mxu0 %v681
        %v793 = vpop.f32.mrf.mxu0
        %v794 = vadd.f32 %v666, %v793
        %795 = vmatmul.f32.gmra.mxu0 %v684
        %v796 = vpop.f32.mrf.mxu0
        %v797 = vadd.f32 %v666, %v796
        %798 = vmatmul.f32.gmra.mxu0 %v687
        %v799 = vpop.f32.mrf.mxu0
        %v800 = vadd.f32 %v666, %v799
        %801 = vmatmul.f32.gmra.mxu0 %v690
        %v802 = vpop.f32.mrf.mxu0
        %v803 = vadd.f32 %v666, %v802
        %804 = vmatmul.f32.gmra.mxu0 %v693
        %v805 = vpop.f32.mrf.mxu0
        %v806 = vadd.f32 %v666, %v805
        %807 = vmatmul.f32.gmra.mxu0 %v696
        %v808 = vpop.f32.mrf.mxu0
        %v809 = vadd.f32 %v666, %v808
        %810 = vmatmul.f32.gmra.mxu0 %v699
        %v811 = vpop.f32.mrf.mxu0
        %v812 = vadd.f32 %v666, %v811
        %813 = vmatmul.f32.gmra.mxu0 %v702
        %v814 = vpop.f32.mrf.mxu0
        %v815 = vadd.f32 %v666, %v814
        %816 = vmatmul.f32.gmra.mxu0 %v705
        %v817 = vpop.f32.mrf.mxu0
        %v818 = vadd.f32 %v666, %v817
        %819 = vmatmul.f32.gmra.mxu0 %v708
        %v820 = vpop.f32.mrf.mxu0
        %v821 = vadd.f32 %v666, %v820
        %822 = vmatmul.f32.gmra.mxu0 %v711
        %v823 = vpop.f32.mrf.mxu0
        %v824 = vadd.f32 %v666, %v823
        %825 = vmatmul.f32.gmra.mxu0 %v714
        %v826 = vpop.f32.mrf.mxu0
        %v827 = vadd.f32 %v666, %v826
        %828 = vmatmul.f32.gmra.mxu0 %v717
        %v829 = vpop.f32.mrf.mxu0
        %v830 = vadd.f32 %v666, %v829
        %831 = vmatmul.f32.gmra.mxu0 %v720
        %v832 = vpop.f32.mrf.mxu0
        %v833 = vadd.f32 %v666, %v832
        %834 = vmatmul.f32.gmra.mxu0 %v723
        %v835 = vpop.f32.mrf.mxu0
        %v836 = vadd.f32 %v666, %v835
        %837 = vmatmul.f32.gmra.mxu0 %v726
        %v838 = vpop.f32.mrf.mxu0
        %v839 = vadd.f32 %v666, %v838
        %840 = vmatmul.f32.gmra.mxu0 %v729
        %v841 = vpop.f32.mrf.mxu0
        %v842 = vadd.f32 %v666, %v841
        %843 = vmatmul.f32.gmra.mxu0 %v732
        %v844 = vpop.f32.mrf.mxu0
        %v845 = vadd.f32 %v666, %v844
        %846 = vmatmul.f32.gmra.mxu0 %v735
        %v847 = vpop.f32.mrf.mxu0
        %v848 = vadd.f32 %v666, %v847
        %849 = vmatmul.f32.gmra.mxu0 %v738
        %v850 = vpop.f32.mrf.mxu0
        %v851 = vadd.f32 %v666, %v850
        %852 = vmatmul.f32.gmra.mxu0 %v741
        %v853 = vpop.f32.mrf.mxu0
        %v854 = vadd.f32 %v666, %v853
        %855 = vmatmul.f32.gmra.mxu0 %v744
        %v856 = vpop.f32.mrf.mxu0
        %v857 = vadd.f32 %v666, %v856
        %858 = vmatmul.f32.gmra.mxu0 %v747
        %v859 = vpop.f32.mrf.mxu0
        %v860 = vadd.f32 %v666, %v859
        %861 = vmatmul.f32.gmra.mxu0 %v750
        %v862 = vpop.f32.mrf.mxu0
        %v863 = vadd.f32 %v666, %v862
        %864 = vmatmul.f32.gmra.mxu0 %v753
        %v865 = vpop.f32.mrf.mxu0
        %v866 = vadd.f32 %v666, %v865
        %867 = vmatmul.f32.gmra.mxu0 %v756
        %v868 = vpop.f32.mrf.mxu0
        %v869 = vadd.f32 %v666, %v868
        %870 = vmatmul.f32.gmra.mxu0 %v759
        %v871 = vpop.f32.mrf.mxu0
        %v872 = vadd.f32 %v666, %v871
        %873 = vmatmul.f32.gmra.mxu0 %v762
        %v874 = vpop.f32.mrf.mxu0
        %v875 = vadd.f32 %v666, %v874
        %876 = vdwg.mxu0
        %877 = vmax.xlane.f32.xlu0 %v782
        %v878 = vpop.xlane.xlu0 %877
        %879 = vmax.xlane.f32.xlu0 %v785
        %v880 = vpop.xlane.xlu0 %879
        %881 = vmax.xlane.f32.xlu0 %v788
        %v882 = vpop.xlane.xlu0 %881
        %883 = vmax.xlane.f32.xlu0 %v791
        %v884 = vpop.xlane.xlu0 %883
        %885 = vmax.xlane.f32.xlu0 %v794
        %v886 = vpop.xlane.xlu0 %885
        %887 = vmax.xlane.f32.xlu0 %v797
        %v888 = vpop.xlane.xlu0 %887
        %889 = vmax.xlane.f32.xlu0 %v800
        %v890 = vpop.xlane.xlu0 %889
        %891 = vmax.xlane.f32.xlu0 %v803
        %v892 = vpop.xlane.xlu0 %891
        %893 = vmax.xlane.f32.xlu0 %v806
        %v894 = vpop.xlane.xlu0 %893
        %895 = vmax.xlane.f32.xlu0 %v809
        %v896 = vpop.xlane.xlu0 %895
        %897 = vmax.xlane.f32.xlu0 %v812
        %v898 = vpop.xlane.xlu0 %897
        %899 = vmax.xlane.f32.xlu0 %v815
        %v900 = vpop.xlane.xlu0 %899
        %901 = vmax.xlane.f32.xlu0 %v818
        %v902 = vpop.xlane.xlu0 %901
        %903 = vmax.xlane.f32.xlu0 %v821
        %v904 = vpop.xlane.xlu0 %903
        %905 = vmax.xlane.f32.xlu0 %v824
        %v906 = vpop.xlane.xlu0 %905
        %907 = vmax.xlane.f32.xlu0 %v827
        %v908 = vpop.xlane.xlu0 %907
        %909 = vmax.xlane.f32.xlu0 %v830
        %v910 = vpop.xlane.xlu0 %909
        %911 = vmax.xlane.f32.xlu0 %v833
        %v912 = vpop.xlane.xlu0 %911
        %913 = vmax.xlane.f32.xlu0 %v836
        %v914 = vpop.xlane.xlu0 %913
        %915 = vmax.xlane.f32.xlu0 %v839
        %v916 = vpop.xlane.xlu0 %915
        %917 = vmax.xlane.f32.xlu0 %v842
        %v918 = vpop.xlane.xlu0 %917
        %919 = vmax.xlane.f32.xlu0 %v845
        %v920 = vpop.xlane.xlu0 %919
        %921 = vmax.xlane.f32.xlu0 %v848
        %v922 = vpop.xlane.xlu0 %921
        %923 = vmax.xlane.f32.xlu0 %v851
        %v924 = vpop.xlane.xlu0 %923
        %925 = vmax.xlane.f32.xlu0 %v854
        %v926 = vpop.xlane.xlu0 %925
        %927 = vmax.xlane.f32.xlu0 %v857
        %v928 = vpop.xlane.xlu0 %927
        %929 = vmax.xlane.f32.xlu0 %v860
        %v930 = vpop.xlane.xlu0 %929
        %931 = vmax.xlane.f32.xlu0 %v863
        %v932 = vpop.xlane.xlu0 %931
        %933 = vmax.xlane.f32.xlu0 %v866
        %v934 = vpop.xlane.xlu0 %933
        %935 = vmax.xlane.f32.xlu0 %v869
        %v936 = vpop.xlane.xlu0 %935
        %937 = vmax.xlane.f32.xlu0 %v872
        %v938 = vpop.xlane.xlu0 %937
        %939 = vmax.xlane.f32.xlu0 %v875
        %v940 = vpop.xlane.xlu0 %939
        %v941 = vsub.f32 %v782, %v878
        %v942 = vsub.f32 %v785, %v880
        %v943 = vsub.f32 %v788, %v882
        %v944 = vsub.f32 %v791, %v884
        %v945 = vsub.f32 %v794, %v886
        %v946 = vsub.f32 %v797, %v888
        %v947 = vsub.f32 %v800, %v890
        %v948 = vsub.f32 %v803, %v892
        %v949 = vsub.f32 %v806, %v894
        %v950 = vsub.f32 %v809, %v896
        %v951 = vsub.f32 %v812, %v898
        %v952 = vsub.f32 %v815, %v900
        %v953 = vsub.f32 %v818, %v902
        %v954 = vsub.f32 %v821, %v904
        %v955 = vsub.f32 %v824, %v906
        %v956 = vsub.f32 %v827, %v908
        %v957 = vsub.f32 %v830, %v910
        %v958 = vsub.f32 %v833, %v912
        %v959 = vsub.f32 %v836, %v914
        %v960 = vsub.f32 %v839, %v916
        %v961 = vsub.f32 %v842, %v918
        %v962 = vsub.f32 %v845, %v920
        %v963 = vsub.f32 %v848, %v922
        %v964 = vsub.f32 %v851, %v924
        %v965 = vsub.f32 %v854, %v926
        %v966 = vsub.f32 %v857, %v928
        %v967 = vsub.f32 %v860, %v930
        %v968 = vsub.f32 %v863, %v932
        %v969 = vsub.f32 %v866, %v934
        %v970 = vsub.f32 %v869, %v936
        %v971 = vsub.f32 %v872, %v938
        %v972 = vsub.f32 %v875, %v940
        %v973 = vmul.f32 %v941, 1.442695
        %v974 = vpow.pop %v973
        %v975 = vmul.f32 %v942, 1.442695
        %v976 = vpow.pop %v975
        %v977 = vmul.f32 %v943, 1.442695
        %v978 = vpow.pop %v977
        %v979 = vmul.f32 %v944, 1.442695
        %v980 = vpow.pop %v979
        %v981 = vmul.f32 %v945, 1.442695
        %v982 = vpow.pop %v981
        %v983 = vmul.f32 %v946, 1.442695
        %v984 = vpow.pop %v983
        %v985 = vmul.f32 %v947, 1.442695
        %v986 = vpow.pop %v985
        %v987 = vmul.f32 %v948, 1.442695
        %v988 = vpow.pop %v987
        %v989 = vmul.f32 %v949, 1.442695
        %v990 = vpow.pop %v989
        %v991 = vmul.f32 %v950, 1.442695
        %v992 = vpow.pop %v991
        %v993 = vmul.f32 %v951, 1.442695
        %v994 = vpow.pop %v993
        %v995 = vmul.f32 %v952, 1.442695
        %v996 = vpow.pop %v995
        %v997 = vmul.f32 %v953, 1.442695
        %v998 = vpow.pop %v997
        %v999 = vmul.f32 %v954, 1.442695
        %v1000 = vpow.pop %v999
        %v1001 = vmul.f32 %v955, 1.442695
        %v1002 = vpow.pop %v1001
        %v1003 = vmul.f32 %v956, 1.442695
        %v1004 = vpow.pop %v1003
        %v1005 = vmul.f32 %v957, 1.442695
        %v1006 = vpow.pop %v1005
        %v1007 = vmul.f32 %v958, 1.442695
        %v1008 = vpow.pop %v1007
        %v1009 = vmul.f32 %v959, 1.442695
        %v1010 = vpow.pop %v1009
        %v1011 = vmul.f32 %v960, 1.442695
        %v1012 = vpow.pop %v1011
        %v1013 = vmul.f32 %v961, 1.442695
        %v1014 = vpow.pop %v1013
        %v1015 = vmul.f32 %v962, 1.442695
        %v1016 = vpow.pop %v1015
        %v1017 = vmul.f32 %v963, 1.442695
        %v1018 = vpow.pop %v1017
        %v1019 = vmul.f32 %v964, 1.442695
        %v1020 = vpow.pop %v1019
        %v1021 = vmul.f32 %v965, 1.442695
        %v1022 = vpow.pop %v1021
        %v1023 = vmul.f32 %v966, 1.442695
        %v1024 = vpow.pop %v1023
        %v1025 = vmul.f32 %v967, 1.442695
        %v1026 = vpow.pop %v1025
        %v1027 = vmul.f32 %v968, 1.442695
        %v1028 = vpow.pop %v1027
        %v1029 = vmul.f32 %v969, 1.442695
        %v1030 = vpow.pop %v1029
        %v1031 = vmul.f32 %v970, 1.442695
        %v1032 = vpow.pop %v1031
        %v1033 = vmul.f32 %v971, 1.442695
        %v1034 = vpow.pop %v1033
        %v1035 = vmul.f32 %v972, 1.442695
        %v1036 = vpow.pop %v1035
        %1037 = vadd.xlane.f32.xlu0 %v974
        %v1038 = vpop.xlane.xlu0 %1037
        %1039 = vadd.xlane.f32.xlu0 %v976
        %v1040 = vpop.xlane.xlu0 %1039
        %1041 = vadd.xlane.f32.xlu0 %v978
        %v1042 = vpop.xlane.xlu0 %1041
        %1043 = vadd.xlane.f32.xlu0 %v980
        %v1044 = vpop.xlane.xlu0 %1043
        %1045 = vadd.xlane.f32.xlu0 %v982
        %v1046 = vpop.xlane.xlu0 %1045
        %1047 = vadd.xlane.f32.xlu0 %v984
        %v1048 = vpop.xlane.xlu0 %1047
        %1049 = vadd.xlane.f32.xlu0 %v986
        %v1050 = vpop.xlane.xlu0 %1049
        %1051 = vadd.xlane.f32.xlu0 %v988
        %v1052 = vpop.xlane.xlu0 %1051
        %1053 = vadd.xlane.f32.xlu0 %v990
        %v1054 = vpop.xlane.xlu0 %1053
        %1055 = vadd.xlane.f32.xlu0 %v992
        %v1056 = vpop.xlane.xlu0 %1055
        %1057 = vadd.xlane.f32.xlu0 %v994
        %v1058 = vpop.xlane.xlu0 %1057
        %1059 = vadd.xlane.f32.xlu0 %v996
        %v1060 = vpop.xlane.xlu0 %1059
        %1061 = vadd.xlane.f32.xlu0 %v998
        %v1062 = vpop.xlane.xlu0 %1061
        %1063 = vadd.xlane.f32.xlu0 %v1000
        %v1064 = vpop.xlane.xlu0 %1063
        %1065 = vadd.xlane.f32.xlu0 %v1002
        %v1066 = vpop.xlane.xlu0 %1065
        %1067 = vadd.xlane.f32.xlu0 %v1004
        %v1068 = vpop.xlane.xlu0 %1067
        %1069 = vadd.xlane.f32.xlu0 %v1006
        %v1070 = vpop.xlane.xlu0 %1069
        %1071 = vadd.xlane.f32.xlu0 %v1008
        %v1072 = vpop.xlane.xlu0 %1071
        %1073 = vadd.xlane.f32.xlu0 %v1010
        %v1074 = vpop.xlane.xlu0 %1073
        %1075 = vadd.xlane.f32.xlu0 %v1012
        %v1076 = vpop.xlane.xlu0 %1075
        %1077 = vadd.xlane.f32.xlu0 %v1014
        %v1078 = vpop.xlane.xlu0 %1077
        %1079 = vadd.xlane.f32.xlu0 %v1016
        %v1080 = vpop.xlane.xlu0 %1079
        %1081 = vadd.xlane.f32.xlu0 %v1018
        %v1082 = vpop.xlane.xlu0 %1081
        %1083 = vadd.xlane.f32.xlu0 %v1020
        %v1084 = vpop.xlane.xlu0 %1083
        %1085 = vadd.xlane.f32.xlu0 %v1022
        %v1086 = vpop.xlane.xlu0 %1085
        %1087 = vadd.xlane.f32.xlu0 %v1024
        %v1088 = vpop.xlane.xlu0 %1087
        %1089 = vadd.xlane.f32.xlu0 %v1026
        %v1090 = vpop.xlane.xlu0 %1089
        %1091 = vadd.xlane.f32.xlu0 %v1028
        %v1092 = vpop.xlane.xlu0 %1091
        %1093 = vadd.xlane.f32.xlu0 %v1030
        %v1094 = vpop.xlane.xlu0 %1093
        %1095 = vadd.xlane.f32.xlu0 %v1032
        %v1096 = vpop.xlane.xlu0 %1095
        %1097 = vadd.xlane.f32.xlu0 %v1034
        %v1098 = vpop.xlane.xlu0 %1097
        %1099 = vadd.xlane.f32.xlu0 %v1036
        %v1100 = vpop.xlane.xlu0 %1099
        %v1101 = vrcp.pop %v1038
        %v1102 = vmul.f32 %v1038, %v1101
        %v1103 = vsub.f32 1.0, %v1102
        %v1104 = vmul.f32 %v1101, %v1103
        %v1105 = vadd.f32 %v1101, %v1104
        %vm1106 = vweird.f32 %v1038
        %vm1107 = vweird.f32 %v1101
        %vm1108 = vmor %vm1106, %vm1107
        %v1109 = vsel %vm1108, %v1101, %v1105
        %v1110 = vand.u32 2147483647, %v1038
        %vm1111 = vcmp.eq.f32.partialorder %v1110, 8.507059e+37
        %v1112 = vand.u32 %v1038, 2147483648
        %v1113 = vor.u32 1.1754944e-38, %v1112
        %v1114 = vsel %vm1111, %v1113, %v1109
        %v1115 = vrcp.pop %v1040
        %v1116 = vmul.f32 %v1040, %v1115
        %v1117 = vsub.f32 1.0, %v1116
        %v1118 = vmul.f32 %v1115, %v1117
        %v1119 = vadd.f32 %v1115, %v1118
        %vm1120 = vweird.f32 %v1040
        %vm1121 = vweird.f32 %v1115
        %vm1122 = vmor %vm1120, %vm1121
        %v1123 = vsel %vm1122, %v1115, %v1119
        %v1124 = vand.u32 2147483647, %v1040
        %vm1125 = vcmp.eq.f32.partialorder %v1124, 8.507059e+37
        %v1126 = vand.u32 %v1040, 2147483648
        %v1127 = vor.u32 1.1754944e-38, %v1126
        %v1128 = vsel %vm1125, %v1127, %v1123
        %v1129 = vrcp.pop %v1042
        %v1130 = vmul.f32 %v1042, %v1129
        %v1131 = vsub.f32 1.0, %v1130
        %v1132 = vmul.f32 %v1129, %v1131
        %v1133 = vadd.f32 %v1129, %v1132
        %vm1134 = vweird.f32 %v1042
        %vm1135 = vweird.f32 %v1129
        %vm1136 = vmor %vm1134, %vm1135
        %v1137 = vsel %vm1136, %v1129, %v1133
        %v1138 = vand.u32 2147483647, %v1042
        %vm1139 = vcmp.eq.f32.partialorder %v1138, 8.507059e+37
        %v1140 = vand.u32 %v1042, 2147483648
        %v1141 = vor.u32 1.1754944e-38, %v1140
        %v1142 = vsel %vm1139, %v1141, %v1137
        %v1143 = vrcp.pop %v1044
        %v1144 = vmul.f32 %v1044, %v1143
        %v1145 = vsub.f32 1.0, %v1144
        %v1146 = vmul.f32 %v1143, %v1145
        %v1147 = vadd.f32 %v1143, %v1146
        %vm1148 = vweird.f32 %v1044
        %vm1149 = vweird.f32 %v1143
        %vm1150 = vmor %vm1148, %vm1149
        %v1151 = vsel %vm1150, %v1143, %v1147
        %v1152 = vand.u32 2147483647, %v1044
        %vm1153 = vcmp.eq.f32.partialorder %v1152, 8.507059e+37
        %v1154 = vand.u32 %v1044, 2147483648
        %v1155 = vor.u32 1.1754944e-38, %v1154
        %v1156 = vsel %vm1153, %v1155, %v1151
        %v1157 = vrcp.pop %v1046
        %v1158 = vmul.f32 %v1046, %v1157
        %v1159 = vsub.f32 1.0, %v1158
        %v1160 = vmul.f32 %v1157, %v1159
        %v1161 = vadd.f32 %v1157, %v1160
        %vm1162 = vweird.f32 %v1046
        %vm1163 = vweird.f32 %v1157
        %vm1164 = vmor %vm1162, %vm1163
        %v1165 = vsel %vm1164, %v1157, %v1161
        %v1166 = vand.u32 2147483647, %v1046
        %vm1167 = vcmp.eq.f32.partialorder %v1166, 8.507059e+37
        %v1168 = vand.u32 %v1046, 2147483648
        %v1169 = vor.u32 1.1754944e-38, %v1168
        %v1170 = vsel %vm1167, %v1169, %v1165
        %v1171 = vrcp.pop %v1048
        %v1172 = vmul.f32 %v1048, %v1171
        %v1173 = vsub.f32 1.0, %v1172
        %v1174 = vmul.f32 %v1171, %v1173
        %v1175 = vadd.f32 %v1171, %v1174
        %vm1176 = vweird.f32 %v1048
        %vm1177 = vweird.f32 %v1171
        %vm1178 = vmor %vm1176, %vm1177
        %v1179 = vsel %vm1178, %v1171, %v1175
        %v1180 = vand.u32 2147483647, %v1048
        %vm1181 = vcmp.eq.f32.partialorder %v1180, 8.507059e+37
        %v1182 = vand.u32 %v1048, 2147483648
        %v1183 = vor.u32 1.1754944e-38, %v1182
        %v1184 = vsel %vm1181, %v1183, %v1179
        %v1185 = vrcp.pop %v1050
        %v1186 = vmul.f32 %v1050, %v1185
        %v1187 = vsub.f32 1.0, %v1186
        %v1188 = vmul.f32 %v1185, %v1187
        %v1189 = vadd.f32 %v1185, %v1188
        %vm1190 = vweird.f32 %v1050
        %vm1191 = vweird.f32 %v1185
        %vm1192 = vmor %vm1190, %vm1191
        %v1193 = vsel %vm1192, %v1185, %v1189
        %v1194 = vand.u32 2147483647, %v1050
        %vm1195 = vcmp.eq.f32.partialorder %v1194, 8.507059e+37
        %v1196 = vand.u32 %v1050, 2147483648
        %v1197 = vor.u32 1.1754944e-38, %v1196
        %v1198 = vsel %vm1195, %v1197, %v1193
        %v1199 = vrcp.pop %v1052
        %v1200 = vmul.f32 %v1052, %v1199
        %v1201 = vsub.f32 1.0, %v1200
        %v1202 = vmul.f32 %v1199, %v1201
        %v1203 = vadd.f32 %v1199, %v1202
        %vm1204 = vweird.f32 %v1052
        %vm1205 = vweird.f32 %v1199
        %vm1206 = vmor %vm1204, %vm1205
        %v1207 = vsel %vm1206, %v1199, %v1203
        %v1208 = vand.u32 2147483647, %v1052
        %vm1209 = vcmp.eq.f32.partialorder %v1208, 8.507059e+37
        %v1210 = vand.u32 %v1052, 2147483648
        %v1211 = vor.u32 1.1754944e-38, %v1210
        %v1212 = vsel %vm1209, %v1211, %v1207
        %v1213 = vrcp.pop %v1054
        %v1214 = vmul.f32 %v1054, %v1213
        %v1215 = vsub.f32 1.0, %v1214
        %v1216 = vmul.f32 %v1213, %v1215
        %v1217 = vadd.f32 %v1213, %v1216
        %vm1218 = vweird.f32 %v1054
        %vm1219 = vweird.f32 %v1213
        %vm1220 = vmor %vm1218, %vm1219
        %v1221 = vsel %vm1220, %v1213, %v1217
        %v1222 = vand.u32 2147483647, %v1054
        %vm1223 = vcmp.eq.f32.partialorder %v1222, 8.507059e+37
        %v1224 = vand.u32 %v1054, 2147483648
        %v1225 = vor.u32 1.1754944e-38, %v1224
        %v1226 = vsel %vm1223, %v1225, %v1221
        %v1227 = vrcp.pop %v1056
        %v1228 = vmul.f32 %v1056, %v1227
        %v1229 = vsub.f32 1.0, %v1228
        %v1230 = vmul.f32 %v1227, %v1229
        %v1231 = vadd.f32 %v1227, %v1230
        %vm1232 = vweird.f32 %v1056
        %vm1233 = vweird.f32 %v1227
        %vm1234 = vmor %vm1232, %vm1233
        %v1235 = vsel %vm1234, %v1227, %v1231
        %v1236 = vand.u32 2147483647, %v1056
        %vm1237 = vcmp.eq.f32.partialorder %v1236, 8.507059e+37
        %v1238 = vand.u32 %v1056, 2147483648
        %v1239 = vor.u32 1.1754944e-38, %v1238
        %v1240 = vsel %vm1237, %v1239, %v1235
        %v1241 = vrcp.pop %v1058
        %v1242 = vmul.f32 %v1058, %v1241
        %v1243 = vsub.f32 1.0, %v1242
        %v1244 = vmul.f32 %v1241, %v1243
        %v1245 = vadd.f32 %v1241, %v1244
        %vm1246 = vweird.f32 %v1058
        %vm1247 = vweird.f32 %v1241
        %vm1248 = vmor %vm1246, %vm1247
        %v1249 = vsel %vm1248, %v1241, %v1245
        %v1250 = vand.u32 2147483647, %v1058
        %vm1251 = vcmp.eq.f32.partialorder %v1250, 8.507059e+37
        %v1252 = vand.u32 %v1058, 2147483648
        %v1253 = vor.u32 1.1754944e-38, %v1252
        %v1254 = vsel %vm1251, %v1253, %v1249
        %v1255 = vrcp.pop %v1060
        %v1256 = vmul.f32 %v1060, %v1255
        %v1257 = vsub.f32 1.0, %v1256
        %v1258 = vmul.f32 %v1255, %v1257
        %v1259 = vadd.f32 %v1255, %v1258
        %vm1260 = vweird.f32 %v1060
        %vm1261 = vweird.f32 %v1255
        %vm1262 = vmor %vm1260, %vm1261
        %v1263 = vsel %vm1262, %v1255, %v1259
        %v1264 = vand.u32 2147483647, %v1060
        %vm1265 = vcmp.eq.f32.partialorder %v1264, 8.507059e+37
        %v1266 = vand.u32 %v1060, 2147483648
        %v1267 = vor.u32 1.1754944e-38, %v1266
        %v1268 = vsel %vm1265, %v1267, %v1263
        %v1269 = vrcp.pop %v1062
        %v1270 = vmul.f32 %v1062, %v1269
        %v1271 = vsub.f32 1.0, %v1270
        %v1272 = vmul.f32 %v1269, %v1271
        %v1273 = vadd.f32 %v1269, %v1272
        %vm1274 = vweird.f32 %v1062
        %vm1275 = vweird.f32 %v1269
        %vm1276 = vmor %vm1274, %vm1275
        %v1277 = vsel %vm1276, %v1269, %v1273
        %v1278 = vand.u32 2147483647, %v1062
        %vm1279 = vcmp.eq.f32.partialorder %v1278, 8.507059e+37
        %v1280 = vand.u32 %v1062, 2147483648
        %v1281 = vor.u32 1.1754944e-38, %v1280
        %v1282 = vsel %vm1279, %v1281, %v1277
        %v1283 = vrcp.pop %v1064
        %v1284 = vmul.f32 %v1064, %v1283
        %v1285 = vsub.f32 1.0, %v1284
        %v1286 = vmul.f32 %v1283, %v1285
        %v1287 = vadd.f32 %v1283, %v1286
        %vm1288 = vweird.f32 %v1064
        %vm1289 = vweird.f32 %v1283
        %vm1290 = vmor %vm1288, %vm1289
        %v1291 = vsel %vm1290, %v1283, %v1287
        %v1292 = vand.u32 2147483647, %v1064
        %vm1293 = vcmp.eq.f32.partialorder %v1292, 8.507059e+37
        %v1294 = vand.u32 %v1064, 2147483648
        %v1295 = vor.u32 1.1754944e-38, %v1294
        %v1296 = vsel %vm1293, %v1295, %v1291
        %v1297 = vrcp.pop %v1066
        %v1298 = vmul.f32 %v1066, %v1297
        %v1299 = vsub.f32 1.0, %v1298
        %v1300 = vmul.f32 %v1297, %v1299
        %v1301 = vadd.f32 %v1297, %v1300
        %vm1302 = vweird.f32 %v1066
        %vm1303 = vweird.f32 %v1297
        %vm1304 = vmor %vm1302, %vm1303
        %v1305 = vsel %vm1304, %v1297, %v1301
        %v1306 = vand.u32 2147483647, %v1066
        %vm1307 = vcmp.eq.f32.partialorder %v1306, 8.507059e+37
        %v1308 = vand.u32 %v1066, 2147483648
        %v1309 = vor.u32 1.1754944e-38, %v1308
        %v1310 = vsel %vm1307, %v1309, %v1305
        %v1311 = vrcp.pop %v1068
        %v1312 = vmul.f32 %v1068, %v1311
        %v1313 = vsub.f32 1.0, %v1312
        %v1314 = vmul.f32 %v1311, %v1313
        %v1315 = vadd.f32 %v1311, %v1314
        %vm1316 = vweird.f32 %v1068
        %vm1317 = vweird.f32 %v1311
        %vm1318 = vmor %vm1316, %vm1317
        %v1319 = vsel %vm1318, %v1311, %v1315
        %v1320 = vand.u32 2147483647, %v1068
        %vm1321 = vcmp.eq.f32.partialorder %v1320, 8.507059e+37
        %v1322 = vand.u32 %v1068, 2147483648
        %v1323 = vor.u32 1.1754944e-38, %v1322
        %v1324 = vsel %vm1321, %v1323, %v1319
        %v1325 = vrcp.pop %v1070
        %v1326 = vmul.f32 %v1070, %v1325
        %v1327 = vsub.f32 1.0, %v1326
        %v1328 = vmul.f32 %v1325, %v1327
        %v1329 = vadd.f32 %v1325, %v1328
        %vm1330 = vweird.f32 %v1070
        %vm1331 = vweird.f32 %v1325
        %vm1332 = vmor %vm1330, %vm1331
        %v1333 = vsel %vm1332, %v1325, %v1329
        %v1334 = vand.u32 2147483647, %v1070
        %vm1335 = vcmp.eq.f32.partialorder %v1334, 8.507059e+37
        %v1336 = vand.u32 %v1070, 2147483648
        %v1337 = vor.u32 1.1754944e-38, %v1336
        %v1338 = vsel %vm1335, %v1337, %v1333
        %v1339 = vrcp.pop %v1072
        %v1340 = vmul.f32 %v1072, %v1339
        %v1341 = vsub.f32 1.0, %v1340
        %v1342 = vmul.f32 %v1339, %v1341
        %v1343 = vadd.f32 %v1339, %v1342
        %vm1344 = vweird.f32 %v1072
        %vm1345 = vweird.f32 %v1339
        %vm1346 = vmor %vm1344, %vm1345
        %v1347 = vsel %vm1346, %v1339, %v1343
        %v1348 = vand.u32 2147483647, %v1072
        %vm1349 = vcmp.eq.f32.partialorder %v1348, 8.507059e+37
        %v1350 = vand.u32 %v1072, 2147483648
        %v1351 = vor.u32 1.1754944e-38, %v1350
        %v1352 = vsel %vm1349, %v1351, %v1347
        %v1353 = vrcp.pop %v1074
        %v1354 = vmul.f32 %v1074, %v1353
        %v1355 = vsub.f32 1.0, %v1354
        %v1356 = vmul.f32 %v1353, %v1355
        %v1357 = vadd.f32 %v1353, %v1356
        %vm1358 = vweird.f32 %v1074
        %vm1359 = vweird.f32 %v1353
        %vm1360 = vmor %vm1358, %vm1359
        %v1361 = vsel %vm1360, %v1353, %v1357
        %v1362 = vand.u32 2147483647, %v1074
        %vm1363 = vcmp.eq.f32.partialorder %v1362, 8.507059e+37
        %v1364 = vand.u32 %v1074, 2147483648
        %v1365 = vor.u32 1.1754944e-38, %v1364
        %v1366 = vsel %vm1363, %v1365, %v1361
        %v1367 = vrcp.pop %v1076
        %v1368 = vmul.f32 %v1076, %v1367
        %v1369 = vsub.f32 1.0, %v1368
        %v1370 = vmul.f32 %v1367, %v1369
        %v1371 = vadd.f32 %v1367, %v1370
        %vm1372 = vweird.f32 %v1076
        %vm1373 = vweird.f32 %v1367
        %vm1374 = vmor %vm1372, %vm1373
        %v1375 = vsel %vm1374, %v1367, %v1371
        %v1376 = vand.u32 2147483647, %v1076
        %vm1377 = vcmp.eq.f32.partialorder %v1376, 8.507059e+37
        %v1378 = vand.u32 %v1076, 2147483648
        %v1379 = vor.u32 1.1754944e-38, %v1378
        %v1380 = vsel %vm1377, %v1379, %v1375
        %v1381 = vrcp.pop %v1078
        %v1382 = vmul.f32 %v1078, %v1381
        %v1383 = vsub.f32 1.0, %v1382
        %v1384 = vmul.f32 %v1381, %v1383
        %v1385 = vadd.f32 %v1381, %v1384
        %vm1386 = vweird.f32 %v1078
        %vm1387 = vweird.f32 %v1381
        %vm1388 = vmor %vm1386, %vm1387
        %v1389 = vsel %vm1388, %v1381, %v1385
        %v1390 = vand.u32 2147483647, %v1078
        %vm1391 = vcmp.eq.f32.partialorder %v1390, 8.507059e+37
        %v1392 = vand.u32 %v1078, 2147483648
        %v1393 = vor.u32 1.1754944e-38, %v1392
        %v1394 = vsel %vm1391, %v1393, %v1389
        %v1395 = vrcp.pop %v1080
        %v1396 = vmul.f32 %v1080, %v1395
        %v1397 = vsub.f32 1.0, %v1396
        %v1398 = vmul.f32 %v1395, %v1397
        %v1399 = vadd.f32 %v1395, %v1398
        %vm1400 = vweird.f32 %v1080
        %vm1401 = vweird.f32 %v1395
        %vm1402 = vmor %vm1400, %vm1401
        %v1403 = vsel %vm1402, %v1395, %v1399
        %v1404 = vand.u32 2147483647, %v1080
        %vm1405 = vcmp.eq.f32.partialorder %v1404, 8.507059e+37
        %v1406 = vand.u32 %v1080, 2147483648
        %v1407 = vor.u32 1.1754944e-38, %v1406
        %v1408 = vsel %vm1405, %v1407, %v1403
        %v1409 = vrcp.pop %v1082
        %v1410 = vmul.f32 %v1082, %v1409
        %v1411 = vsub.f32 1.0, %v1410
        %v1412 = vmul.f32 %v1409, %v1411
        %v1413 = vadd.f32 %v1409, %v1412
        %vm1414 = vweird.f32 %v1082
        %vm1415 = vweird.f32 %v1409
        %vm1416 = vmor %vm1414, %vm1415
        %v1417 = vsel %vm1416, %v1409, %v1413
        %v1418 = vand.u32 2147483647, %v1082
        %vm1419 = vcmp.eq.f32.partialorder %v1418, 8.507059e+37
        %v1420 = vand.u32 %v1082, 2147483648
        %v1421 = vor.u32 1.1754944e-38, %v1420
        %v1422 = vsel %vm1419, %v1421, %v1417
        %v1423 = vrcp.pop %v1084
        %v1424 = vmul.f32 %v1084, %v1423
        %v1425 = vsub.f32 1.0, %v1424
        %v1426 = vmul.f32 %v1423, %v1425
        %v1427 = vadd.f32 %v1423, %v1426
        %vm1428 = vweird.f32 %v1084
        %vm1429 = vweird.f32 %v1423
        %vm1430 = vmor %vm1428, %vm1429
        %v1431 = vsel %vm1430, %v1423, %v1427
        %v1432 = vand.u32 2147483647, %v1084
        %vm1433 = vcmp.eq.f32.partialorder %v1432, 8.507059e+37
        %v1434 = vand.u32 %v1084, 2147483648
        %v1435 = vor.u32 1.1754944e-38, %v1434
        %v1436 = vsel %vm1433, %v1435, %v1431
        %v1437 = vrcp.pop %v1086
        %v1438 = vmul.f32 %v1086, %v1437
        %v1439 = vsub.f32 1.0, %v1438
        %v1440 = vmul.f32 %v1437, %v1439
        %v1441 = vadd.f32 %v1437, %v1440
        %vm1442 = vweird.f32 %v1086
        %vm1443 = vweird.f32 %v1437
        %vm1444 = vmor %vm1442, %vm1443
        %v1445 = vsel %vm1444, %v1437, %v1441
        %v1446 = vand.u32 2147483647, %v1086
        %vm1447 = vcmp.eq.f32.partialorder %v1446, 8.507059e+37
        %v1448 = vand.u32 %v1086, 2147483648
        %v1449 = vor.u32 1.1754944e-38, %v1448
        %v1450 = vsel %vm1447, %v1449, %v1445
        %v1451 = vrcp.pop %v1088
        %v1452 = vmul.f32 %v1088, %v1451
        %v1453 = vsub.f32 1.0, %v1452
        %v1454 = vmul.f32 %v1451, %v1453
        %v1455 = vadd.f32 %v1451, %v1454
        %vm1456 = vweird.f32 %v1088
        %vm1457 = vweird.f32 %v1451
        %vm1458 = vmor %vm1456, %vm1457
        %v1459 = vsel %vm1458, %v1451, %v1455
        %v1460 = vand.u32 2147483647, %v1088
        %vm1461 = vcmp.eq.f32.partialorder %v1460, 8.507059e+37
        %v1462 = vand.u32 %v1088, 2147483648
        %v1463 = vor.u32 1.1754944e-38, %v1462
        %v1464 = vsel %vm1461, %v1463, %v1459
        %v1465 = vrcp.pop %v1090
        %v1466 = vmul.f32 %v1090, %v1465
        %v1467 = vsub.f32 1.0, %v1466
        %v1468 = vmul.f32 %v1465, %v1467
        %v1469 = vadd.f32 %v1465, %v1468
        %vm1470 = vweird.f32 %v1090
        %vm1471 = vweird.f32 %v1465
        %vm1472 = vmor %vm1470, %vm1471
        %v1473 = vsel %vm1472, %v1465, %v1469
        %v1474 = vand.u32 2147483647, %v1090
        %vm1475 = vcmp.eq.f32.partialorder %v1474, 8.507059e+37
        %v1476 = vand.u32 %v1090, 2147483648
        %v1477 = vor.u32 1.1754944e-38, %v1476
        %v1478 = vsel %vm1475, %v1477, %v1473
        %v1479 = vrcp.pop %v1092
        %v1480 = vmul.f32 %v1092, %v1479
        %v1481 = vsub.f32 1.0, %v1480
        %v1482 = vmul.f32 %v1479, %v1481
        %v1483 = vadd.f32 %v1479, %v1482
        %vm1484 = vweird.f32 %v1092
        %vm1485 = vweird.f32 %v1479
        %vm1486 = vmor %vm1484, %vm1485
        %v1487 = vsel %vm1486, %v1479, %v1483
        %v1488 = vand.u32 2147483647, %v1092
        %vm1489 = vcmp.eq.f32.partialorder %v1488, 8.507059e+37
        %v1490 = vand.u32 %v1092, 2147483648
        %v1491 = vor.u32 1.1754944e-38, %v1490
        %v1492 = vsel %vm1489, %v1491, %v1487
        %v1493 = vrcp.pop %v1094
        %v1494 = vmul.f32 %v1094, %v1493
        %v1495 = vsub.f32 1.0, %v1494
        %v1496 = vmul.f32 %v1493, %v1495
        %v1497 = vadd.f32 %v1493, %v1496
        %vm1498 = vweird.f32 %v1094
        %vm1499 = vweird.f32 %v1493
        %vm1500 = vmor %vm1498, %vm1499
        %v1501 = vsel %vm1500, %v1493, %v1497
        %v1502 = vand.u32 2147483647, %v1094
        %vm1503 = vcmp.eq.f32.partialorder %v1502, 8.507059e+37
        %v1504 = vand.u32 %v1094, 2147483648
        %v1505 = vor.u32 1.1754944e-38, %v1504
        %v1506 = vsel %vm1503, %v1505, %v1501
        %v1507 = vrcp.pop %v1096
        %v1508 = vmul.f32 %v1096, %v1507
        %v1509 = vsub.f32 1.0, %v1508
        %v1510 = vmul.f32 %v1507, %v1509
        %v1511 = vadd.f32 %v1507, %v1510
        %vm1512 = vweird.f32 %v1096
        %vm1513 = vweird.f32 %v1507
        %vm1514 = vmor %vm1512, %vm1513
        %v1515 = vsel %vm1514, %v1507, %v1511
        %v1516 = vand.u32 2147483647, %v1096
        %vm1517 = vcmp.eq.f32.partialorder %v1516, 8.507059e+37
        %v1518 = vand.u32 %v1096, 2147483648
        %v1519 = vor.u32 1.1754944e-38, %v1518
        %v1520 = vsel %vm1517, %v1519, %v1515
        %v1521 = vrcp.pop %v1098
        %v1522 = vmul.f32 %v1098, %v1521
        %v1523 = vsub.f32 1.0, %v1522
        %v1524 = vmul.f32 %v1521, %v1523
        %v1525 = vadd.f32 %v1521, %v1524
        %vm1526 = vweird.f32 %v1098
        %vm1527 = vweird.f32 %v1521
        %vm1528 = vmor %vm1526, %vm1527
        %v1529 = vsel %vm1528, %v1521, %v1525
        %v1530 = vand.u32 2147483647, %v1098
        %vm1531 = vcmp.eq.f32.partialorder %v1530, 8.507059e+37
        %v1532 = vand.u32 %v1098, 2147483648
        %v1533 = vor.u32 1.1754944e-38, %v1532
        %v1534 = vsel %vm1531, %v1533, %v1529
        %v1535 = vrcp.pop %v1100
        %v1536 = vmul.f32 %v1100, %v1535
        %v1537 = vsub.f32 1.0, %v1536
        %v1538 = vmul.f32 %v1535, %v1537
        %v1539 = vadd.f32 %v1535, %v1538
        %vm1540 = vweird.f32 %v1100
        %vm1541 = vweird.f32 %v1535
        %vm1542 = vmor %vm1540, %vm1541
        %v1543 = vsel %vm1542, %v1535, %v1539
        %v1544 = vand.u32 2147483647, %v1100
        %vm1545 = vcmp.eq.f32.partialorder %v1544, 8.507059e+37
        %v1546 = vand.u32 %v1100, 2147483648
        %v1547 = vor.u32 1.1754944e-38, %v1546
        %v1548 = vsel %vm1545, %v1547, %v1543
        %v1549 = vmul.f32 %v974, %v1114
        %v1550 = vmul.f32 %v976, %v1128
        %v1551 = vmul.f32 %v978, %v1142
        %v1552 = vmul.f32 %v980, %v1156
        %v1553 = vmul.f32 %v982, %v1170
        %v1554 = vmul.f32 %v984, %v1184
        %v1555 = vmul.f32 %v986, %v1198
        %v1556 = vmul.f32 %v988, %v1212
        %v1557 = vmul.f32 %v990, %v1226
        %v1558 = vmul.f32 %v992, %v1240
        %v1559 = vmul.f32 %v994, %v1254
        %v1560 = vmul.f32 %v996, %v1268
        %v1561 = vmul.f32 %v998, %v1282
        %v1562 = vmul.f32 %v1000, %v1296
        %v1563 = vmul.f32 %v1002, %v1310
        %v1564 = vmul.f32 %v1004, %v1324
        %v1565 = vmul.f32 %v1006, %v1338
        %v1566 = vmul.f32 %v1008, %v1352
        %v1567 = vmul.f32 %v1010, %v1366
        %v1568 = vmul.f32 %v1012, %v1380
        %v1569 = vmul.f32 %v1014, %v1394
        %v1570 = vmul.f32 %v1016, %v1408
        %v1571 = vmul.f32 %v1018, %v1422
        %v1572 = vmul.f32 %v1020, %v1436
        %v1573 = vmul.f32 %v1022, %v1450
        %v1574 = vmul.f32 %v1024, %v1464
        %v1575 = vmul.f32 %v1026, %v1478
        %v1576 = vmul.f32 %v1028, %v1492
        %v1577 = vmul.f32 %v1030, %v1506
        %v1578 = vmul.f32 %v1032, %v1520
        %v1579 = vmul.f32 %v1034, %v1534
        %v1580 = vmul.f32 %v1036, %v1548
        %1581 = vxpose.xlu0.b32.start [1/16] %v1549, 128
        %1582 = vxpose.xlu0.b32.cont [2/16] %v1550, 128
        %1583 = vxpose.xlu0.b32.cont [3/16] %v1551, 128
        %1584 = vxpose.xlu0.b32.cont [4/16] %v1552, 128
        %1585 = vxpose.xlu0.b32.cont [5/16] %v1553, 128
        %1586 = vxpose.xlu0.b32.cont [6/16] %v1554, 128
        %1587 = vxpose.xlu0.b32.cont [7/16] %v1555, 128
        %1588 = vxpose.xlu0.b32.cont [8/16] %v1556, 128
        %1589 = vxpose.xlu0.b32.cont [9/16] %v1557, 128
        %1590 = vxpose.xlu0.b32.cont [10/16] %v1558, 128
        %1591 = vxpose.xlu0.b32.cont [11/16] %v1559, 128
        %1592 = vxpose.xlu0.b32.cont [12/16] %v1560, 128
        %1593 = vxpose.xlu0.b32.cont [13/16] %v1561, 128
        %1594 = vxpose.xlu0.b32.cont [14/16] %v1562, 128
        %1595 = vxpose.xlu0.b32.cont [15/16] %v1563, 128
        %1596 = vxpose.xlu0.b32.end [16/16] %v1564, 128
        %v1597 = vpop.trf.xlu0
        %v1598 = vpop.trf.xlu0
        %v1599 = vpop.trf.xlu0
        %v1600 = vpop.trf.xlu0
        %v1601 = vpop.trf.xlu0
        %v1602 = vpop.trf.xlu0
        %v1603 = vpop.trf.xlu0
        %v1604 = vpop.trf.xlu0
        %v1605 = vpop.trf.xlu0
        %v1606 = vpop.trf.xlu0
        %v1607 = vpop.trf.xlu0
        %v1608 = vpop.trf.xlu0
        %v1609 = vpop.trf.xlu0
        %v1610 = vpop.trf.xlu0
        %v1611 = vpop.trf.xlu0
        %v1612 = vpop.trf.xlu0
        %1613 = vxpose.xlu0.b32.start [1/16] %v1565, 128
        %1614 = vxpose.xlu0.b32.cont [2/16] %v1566, 128
        %1615 = vxpose.xlu0.b32.cont [3/16] %v1567, 128
        %1616 = vxpose.xlu0.b32.cont [4/16] %v1568, 128
        %1617 = vxpose.xlu0.b32.cont [5/16] %v1569, 128
        %1618 = vxpose.xlu0.b32.cont [6/16] %v1570, 128
        %1619 = vxpose.xlu0.b32.cont [7/16] %v1571, 128
        %1620 = vxpose.xlu0.b32.cont [8/16] %v1572, 128
        %1621 = vxpose.xlu0.b32.cont [9/16] %v1573, 128
        %1622 = vxpose.xlu0.b32.cont [10/16] %v1574, 128
        %1623 = vxpose.xlu0.b32.cont [11/16] %v1575, 128
        %1624 = vxpose.xlu0.b32.cont [12/16] %v1576, 128
        %1625 = vxpose.xlu0.b32.cont [13/16] %v1577, 128
        %1626 = vxpose.xlu0.b32.cont [14/16] %v1578, 128
        %1627 = vxpose.xlu0.b32.cont [15/16] %v1579, 128
        %1628 = vxpose.xlu0.b32.end [16/16] %v1580, 128
        %v1629 = vpop.trf.xlu0
        %v1630 = vpop.trf.xlu0
        %v1631 = vpop.trf.xlu0
        %v1632 = vpop.trf.xlu0
        %v1633 = vpop.trf.xlu0
        %v1634 = vpop.trf.xlu0
        %v1635 = vpop.trf.xlu0
        %v1636 = vpop.trf.xlu0
        %v1637 = vpop.trf.xlu0
        %v1638 = vpop.trf.xlu0
        %v1639 = vpop.trf.xlu0
        %v1640 = vpop.trf.xlu0
        %v1641 = vpop.trf.xlu0
        %v1642 = vpop.trf.xlu0
        %v1643 = vpop.trf.xlu0
        %v1644 = vpop.trf.xlu0
        %1645 = vst [vmem:[%s354] sm:$0xff] %v1597
        %1646 = vst [vmem:[%s354 + $0x8] sm:$0xff] %v1629
        %1647 = vst [vmem:[%s354 + $0x10] sm:$0xff] %v1598
        %1648 = vst [vmem:[%s354 + $0x18] sm:$0xff] %v1630
        %1649 = vst [vmem:[%s354 + $0x20] sm:$0xff] %v1599
        %1650 = vst [vmem:[%s354 + $0x28] sm:$0xff] %v1631
        %1651 = vst [vmem:[%s354 + $0x30] sm:$0xff] %v1600
        %1652 = vst [vmem:[%s354 + $0x38] sm:$0xff] %v1632
        %1653 = vst [vmem:[%s354 + $0x40] sm:$0xff] %v1601
        %1654 = vst [vmem:[%s354 + $0x48] sm:$0xff] %v1633
        %1655 = vst [vmem:[%s354 + $0x50] sm:$0xff] %v1602
        %1656 = vst [vmem:[%s354 + $0x58] sm:$0xff] %v1634
        %1657 = vst [vmem:[%s354 + $0x60] sm:$0xff] %v1603
        %1658 = vst [vmem:[%s354 + $0x68] sm:$0xff] %v1635
        %1659 = vst [vmem:[%s354 + $0x70] sm:$0xff] %v1604
        %1660 = vst [vmem:[%s354 + $0x78] sm:$0xff] %v1636
        %1661 = vst [vmem:[%s354 + $0x80] sm:$0xff] %v1605
        %1662 = vst [vmem:[%s354 + $0x88] sm:$0xff] %v1637
        %1663 = vst [vmem:[%s354 + $0x90] sm:$0xff] %v1606
        %1664 = vst [vmem:[%s354 + $0x98] sm:$0xff] %v1638
        %1665 = vst [vmem:[%s354 + $0xa0] sm:$0xff] %v1607
        %1666 = vst [vmem:[%s354 + $0xa8] sm:$0xff] %v1639
        %1667 = vst [vmem:[%s354 + $0xb0] sm:$0xff] %v1608
        %1668 = vst [vmem:[%s354 + $0xb8] sm:$0xff] %v1640
        %1669 = vst [vmem:[%s354 + $0xc0] sm:$0xff] %v1609
        %1670 = vst [vmem:[%s354 + $0xc8] sm:$0xff] %v1641
        %1671 = vst [vmem:[%s354 + $0xd0] sm:$0xff] %v1610
        %1672 = vst [vmem:[%s354 + $0xd8] sm:$0xff] %v1642
        %1673 = vst [vmem:[%s354 + $0xe0] sm:$0xff] %v1611
        %1674 = vst [vmem:[%s354 + $0xe8] sm:$0xff] %v1643
        %1675 = vst [vmem:[%s354 + $0xf0] sm:$0xff] %v1612
        %1676 = vst [vmem:[%s354 + $0xf8] sm:$0xff] %v1644
        %v1677 = vmax.f32 %v1549, %v1553
        %v1678 = vmax.f32 %v1550, %v1554
        %v1679 = vmax.f32 %v1551, %v1555
        %v1680 = vmax.f32 %v1552, %v1556
        %v1681 = vmax.f32 %v1677, %v1557
        %v1682 = vmax.f32 %v1678, %v1558
        %v1683 = vmax.f32 %v1679, %v1559
        %v1684 = vmax.f32 %v1680, %v1560
        %v1685 = vmax.f32 %v1681, %v1561
        %v1686 = vmax.f32 %v1682, %v1562
        %v1687 = vmax.f32 %v1683, %v1563
        %v1688 = vmax.f32 %v1684, %v1564
        %v1689 = vmax.f32 %v1685, %v1565
        %v1690 = vmax.f32 %v1686, %v1566
        %v1691 = vmax.f32 %v1687, %v1567
        %v1692 = vmax.f32 %v1688, %v1568
        %v1693 = vmax.f32 %v1689, %v1569
        %v1694 = vmax.f32 %v1690, %v1570
        %v1695 = vmax.f32 %v1691, %v1571
        %v1696 = vmax.f32 %v1692, %v1572
        %v1697 = vmax.f32 %v1693, %v1573
        %v1698 = vmax.f32 %v1694, %v1574
        %v1699 = vmax.f32 %v1695, %v1575
        %v1700 = vmax.f32 %v1696, %v1576
        %v1701 = vmax.f32 %v1697, %v1577
        %v1702 = vmax.f32 %v1698, %v1578
        %v1703 = vmax.f32 %v1699, %v1579
        %v1704 = vmax.f32 %v1700, %v1580
        %v1705 = vmax.f32 %v1701, %v1702
        %v1706 = vmax.f32 %v1703, %v1704
        %v1707 = vmax.f32 %v1705, %v1706
        %v1708 = vrot.slane %v1707, 4
        %v1709 = vmax.f32 %v1707, %v1708
        %v1710 = vrot.slane %v1709, 2
        %v1711 = vmax.f32 %v1709, %v1710
        %v1712 = vrot.slane %v1711, 1
        %v1713 = vmax.f32 %v1711, %v1712
        %p1714 = scmp.eq.s32.totalorder %s32, 0
        // Predicated region
        $region49: #{tpu_custom_call.1} parent=47 // pred_check
          %p1715 = pneg %p1714
        $region50: #{tpu_custom_call.1} parent=47 // pred_check_branch
          %1717 = sbr.rel (%p1715) target = $region52
        $region51: #{tpu_custom_call.1} parent=47 // pred_region
          %1718 = vst [vmem:[%s360] sm:$0x1] %v1713
        $region52: #{tpu_custom_call.1} parent=47 // pred_fallthru
          _
        %p1719 = scmp.ne.s32.totalorder %s32, 0
        // Predicated region
        $region53: #{tpu_custom_call.1} parent=47 // pred_check
          %p1720 = pneg %p1719
        $region54: #{tpu_custom_call.1} parent=47 // pred_check_branch
          %1722 = sbr.rel (%p1720) target = $region56
        $region55: #{tpu_custom_call.1} parent=47 // pred_region
          %v1723 = vld [vmem:[%s360] sm:$0x1]
          %v1724 = vmax.f32 %v1723, %v1713
          %1725 = vst [vmem:[%s360] sm:$0x1] %v1724
        $region56: #{tpu_custom_call.1} parent=47 // pred_fallthru
          _
        // Predicated region
        $region57: #{tpu_custom_call.1} parent=47 // pred_check
          %p1726 = pneg %p1714
        $region58: #{tpu_custom_call.1} parent=47 // pred_check_branch
          %1728 = sbr.rel (%p1726) target = $region60
        $region59: #{tpu_custom_call.1} parent=47 // pred_region
          %v1729 = vld [vmem:[%s360] sm:$0x1]
          %v1730 = vld [vmem:[%s5] sm:$0xff]
          %v1731 = vld [vmem:[%s5 + $0x8] sm:$0xff]
          %v1732 = vld [vmem:[%s5 + $0x10] sm:$0xff]
          %v1733 = vld [vmem:[%s5 + $0x18] sm:$0xff]
          %v1734 = vld [vmem:[%s5 + $0x20] sm:$0xff]
          %v1735 = vld [vmem:[%s5 + $0x28] sm:$0xff]
          %v1736 = vld [vmem:[%s5 + $0x30] sm:$0xff]
          %v1737 = vld [vmem:[%s5 + $0x38] sm:$0xff]
          %v1738 = vld [vmem:[%s5 + $0x40] sm:$0xff]
          %v1739 = vld [vmem:[%s5 + $0x48] sm:$0xff]
          %v1740 = vld [vmem:[%s5 + $0x50] sm:$0xff]
          %v1741 = vld [vmem:[%s5 + $0x58] sm:$0xff]
          %v1742 = vld [vmem:[%s5 + $0x60] sm:$0xff]
          %v1743 = vld [vmem:[%s5 + $0x68] sm:$0xff]
          %v1744 = vld [vmem:[%s5 + $0x70] sm:$0xff]
          %v1745 = vld [vmem:[%s5 + $0x78] sm:$0xff]
          %v1746 = vmax.f32 %v1730, 0.0
          %v1747 = vmax.f32 %v1731, 0.0
          %v1748 = vmax.f32 %v1732, 0.0
          %v1749 = vmax.f32 %v1733, 0.0
          %v1750 = vmax.f32 %v1734, 0.0
          %v1751 = vmax.f32 %v1735, 0.0
          %v1752 = vmax.f32 %v1736, 0.0
          %v1753 = vmax.f32 %v1737, 0.0
          %v1754 = vmax.f32 %v1738, 0.0
          %v1755 = vmax.f32 %v1739, 0.0
          %v1756 = vmax.f32 %v1740, 0.0
          %v1757 = vmax.f32 %v1741, 0.0
          %v1758 = vmax.f32 %v1742, 0.0
          %v1759 = vmax.f32 %v1743, 0.0
          %v1760 = vmax.f32 %v1744, 0.0
          %v1761 = vmax.f32 %v1745, 0.0
          %v1762 = vld [vmem:[%s6] sm:$0x1]
          %1763 = vmatpush.msra.mxu0 %v1761
          %1764 = vmatpush.msra.mxu0 %v1760
          %1765 = vmatpush.msra.mxu0 %v1759
          %1766 = vmatpush.msra.mxu0 %v1758
          %1767 = vmatpush.msra.mxu0 %v1757
          %1768 = vmatpush.msra.mxu0 %v1756
          %1769 = vmatpush.msra.mxu0 %v1755
          %1770 = vmatpush.msra.mxu0 %v1754
          %1771 = vmatpush.msra.mxu0 %v1753
          %1772 = vmatpush.msra.mxu0 %v1752
          %1773 = vmatpush.msra.mxu0 %v1751
          %1774 = vmatpush.msra.mxu0 %v1750
          %1775 = vmatpush.msra.mxu0 %v1749
          %1776 = vmatpush.msra.mxu0 %v1748
          %1777 = vmatpush.msra.mxu0 %v1747
          %1778 = vmatpush.msra.mxu0 %v1746
          %1779 = vmatmul.f32.gmra.mxu0 %v1729
          %v1780 = vpop.f32.mrf.mxu0
          %v1781 = vadd.f32 %v1762, %v1780
          %1782 = vdwg.mxu0
          %vm1783 = vcmask 73728
          %1784 = vst.msk [vmem:[%s366] sm:$0x1] %vm1783, %v1781
        $region60: #{tpu_custom_call.1} parent=47 // pred_fallthru
          _
        %s1785 = sand.u32 %s203, 1
        %s1786 = scalar_lea.sflag [#allocation3], %s1785
        %s1787 = sand.u32 %s203, 1
        %s1788 = smul.addr %s1787, 256
        %s1789 = scalar_lea.vmem [#allocation2], %s1788
        %s1790 = sand.u32 %s27, 1
        %s1791 = scalar_lea.sflag [#allocation5], %s1790
        %s1792 = sand.u32 %s229, 1
        %s1793 = scalar_lea.vmem [#allocation4], %s1792
        %s1794 = sand.u32 %s27, 1
        %s1795 = scalar_lea.sflag [#allocation5], %s1794
        %s1796 = sand.u32 %s255, 1
        %s1797 = scalar_lea.vmem [#allocation6], %s1796
        // Predicated region
        $region61: #{tpu_custom_call.1} parent=47 // pred_check
          %p1798 = pneg %p213
        $region62: #{tpu_custom_call.1} parent=47 // pred_check_branch
          %1800 = sbr.rel (%p1798) target = $region64
        $region63: #{tpu_custom_call.1} parent=47 // pred_region
          %s1801 = smul.u32 2, %s32
          %1803 = vsyncadd %s1786, 0
          %s1804 = smul.addr %s31, 32
          %s1805 = sadd.s32 %s1801, %s1804
          %s1806 = smul.addr %s1805, 8
          %s1807 = scalar_lea.hbm %s7, %s1806
          %s1808 = sshll.u32 %s1789, 4
          %s1809 = int_to_ptr.vmem [resolvable:$true] %s1808
          %s1810 = sshll.u32 %s1807, 4
          %s1811 = int_to_ptr.hbm [resolvable:$true] %s1810
          %1816 = dma.vmem_to_hbm [thread:$0]  %s1809, 4096, %s1811, %s1786, 256, 256, 16
        $region64: #{tpu_custom_call.1} parent=47 // pred_fallthru
          _
        // Predicated region
        $region65: #{tpu_custom_call.1} parent=47 // pred_check
          %p1817 = pneg %p239
        $region66: #{tpu_custom_call.1} parent=47 // pred_check_branch
          %1819 = sbr.rel (%p1817) target = $region68
        $region67: #{tpu_custom_call.1} parent=47 // pred_region
          %1821 = vsyncadd %s1791, 0
          %s1822 = scalar_lea.hbm %s8, %s31
          %s1824 = sshll.u32 %s1793, 4
          %s1825 = int_to_ptr.vmem [resolvable:$true] %s1824
          %s1826 = sshll.u32 %s1822, 4
          %s1827 = int_to_ptr.hbm [resolvable:$true] %s1826
          %1829 = dma.vmem_to_hbm [thread:$0]  %s1825, 16, %s1827, %s1791
        $region68: #{tpu_custom_call.1} parent=47 // pred_fallthru
          _
        // Predicated region
        $region69: #{tpu_custom_call.1} parent=47 // pred_check
          %p1830 = pneg %p265
        $region70: #{tpu_custom_call.1} parent=47 // pred_check_branch
          %1832 = sbr.rel (%p1830) target = $region72
        $region71: #{tpu_custom_call.1} parent=47 // pred_region
          %1834 = vsyncadd %s1795, 0
          %s1835 = scalar_lea.hbm %s9, %s31
          %s1837 = sshll.u32 %s1797, 4
          %s1838 = int_to_ptr.vmem [resolvable:$true] %s1837
          %s1839 = sshll.u32 %s1835, 4
          %s1840 = int_to_ptr.hbm [resolvable:$true] %s1839
          %1842 = dma.vmem_to_hbm [thread:$0]  %s1838, 16, %s1840, %s1795
        $region72: #{tpu_custom_call.1} parent=47 // pred_fallthru
          _
      $region48: #{tpu_custom_call.1} parent=5 // pred_fallthru
        _
      %p1843 = scmp.le.s32.totalorder 2, %s22
      // Predicated region
      $region73: #{tpu_custom_call.1} parent=5 // pred_check
        %p1844 = pneg %p1843
      $region74: #{tpu_custom_call.1} parent=5 // pred_check_branch
        %1846 = sbr.rel (%p1844) target = $region76
      $region75: #{tpu_custom_call.1} parent=5 // pred_region
        %s1847 = ssub.s32 %s22, 2
        // Predicated region
        $region77: #{tpu_custom_call.1} parent=75 // pred_check
          %p1848 = pneg %p219
        $region78: #{tpu_custom_call.1} parent=75 // pred_check_branch
          %1850 = sbr.rel (%p1848) target = $region80
        $region79: #{tpu_custom_call.1} parent=75 // pred_region
          %s1851 = sand.u32 %s204, 1
          %s1852 = scalar_lea.sflag [#allocation3], %s1851
          %s1853 = sand.u32 %s204, 1
          %s1854 = smul.addr %s1853, 256
          %s1855 = scalar_lea.vmem [#allocation2], %s1854
          %1857 = dma.done %s1852, 4096
        $region80: #{tpu_custom_call.1} parent=75 // pred_fallthru
          _
        // Predicated region
        $region81: #{tpu_custom_call.1} parent=75 // pred_check
          %p1858 = pneg %p245
        $region82: #{tpu_custom_call.1} parent=75 // pred_check_branch
          %1860 = sbr.rel (%p1858) target = $region84
        $region83: #{tpu_custom_call.1} parent=75 // pred_region
          %s1861 = sand.u32 %s28, 1
          %s1862 = scalar_lea.sflag [#allocation5], %s1861
          %s1863 = sand.u32 %s230, 1
          %s1864 = scalar_lea.vmem [#allocation4], %s1863
          %1866 = dma.done %s1862, 16
        $region84: #{tpu_custom_call.1} parent=75 // pred_fallthru
          _
        // Predicated region
        $region85: #{tpu_custom_call.1} parent=75 // pred_check
          %p1867 = pneg %p271
        $region86: #{tpu_custom_call.1} parent=75 // pred_check_branch
          %1869 = sbr.rel (%p1867) target = $region88
        $region87: #{tpu_custom_call.1} parent=75 // pred_region
          %s1870 = sand.u32 %s28, 1
          %s1871 = scalar_lea.sflag [#allocation5], %s1870
          %s1872 = sand.u32 %s256, 1
          %s1873 = scalar_lea.vmem [#allocation6], %s1872
          %1875 = dma.done %s1871, 16
        $region88: #{tpu_custom_call.1} parent=75 // pred_fallthru
          _
      $region76: #{tpu_custom_call.1} parent=5 // pred_fallthru
        _
    $region6: #{tpu_custom_call.1} parent=1 // loop_footer
      %s26 = sadd.s32 1, %s22
    $region7: #{tpu_custom_call.1} parent=1 // loop_footer_branch
      %21 = sbr.rel target = $region3
    $region8: #{tpu_custom_call.1} parent=1 // loop_exit
      _
    %1876 = vsyncpa [#allocation3], 1
    %s1877 = scalar_lea.sflag [#allocation3], 1
    %1878 = vsyncpa %s1877, 1
    %1879 = vsyncpa [#allocation5], 1
    %s1880 = scalar_lea.sflag [#allocation5], 1
    %1881 = vsyncpa %s1880, 1

</llo_original>
